<compile_context>
chip_gen: v6e
topology: v6e:2x2x1
jax: 0.10.0
libtpu: 0.0.40
codegen_flags: <defaults>
</compile_context>

<pallas_src>
import jax
import jax.numpy as jnp
from jax.experimental import pallas as pl
from jax.experimental.pallas import tpu as pltpu


def convlstm_kernel(col_ref, w_ref, b_ref, c_ref, h_out_ref, c_out_ref):
    """One batch tile (Bt images) per grid step, transposed formulation.

    col_ref  : (Bt, Kp, M)    bf16  channels-first im2col patches (K zero-padded to Kp)
    w_ref    : (4*C_hid, Kp)  bf16  conv weight, column index = (dy*3 + dx)*C_tot + i
    b_ref    : (4*C_hid, 1)   f32   conv bias (column vector, broadcasts over lanes)
    c_ref    : (Bt, C_hid, M) f32   previous cell state
    h_out    : (Bt, C_hid, M) f32   new hidden state
    c_out    : (Bt, C_hid, M) f32   new cell state
    """
    c_hid = w_ref.shape[0] // 4
    bt_tile = col_ref.shape[0]

    w = w_ref[...]                    # loaded once per grid step (hoisted)
    bias = b_ref[...]                 # (4*C_hid, 1) f32, lane-broadcast below

    for bt in range(bt_tile):         # static unroll over the batch tile
        col = col_ref[bt]             # (Kp, M) bf16
        # Single large-K matmul on the MXU, f32 accumulation, lane axis = H*W.
        gates = jnp.dot(w, col, preferred_element_type=jnp.float32) + bias

        # gates.chunk(4, dim=channel) order: in, remember(forget), out, cell.
        # All slices are 8-aligned sublane slices of a (4*C_hid, M) f32 value.
        sig = jax.nn.sigmoid(gates[0:3 * c_hid])
        in_g = sig[0 * c_hid:1 * c_hid]
        rem_g = sig[1 * c_hid:2 * c_hid]
        out_g = sig[2 * c_hid:3 * c_hid]
        cell_g = jnp.tanh(gates[3 * c_hid:4 * c_hid])

        prev_cell = c_ref[bt]         # (C_hid, M) f32
        cell = rem_g * prev_cell + in_g * cell_g
        hidden = out_g * jnp.tanh(cell)

        h_out_ref[bt] = hidden.astype(h_out_ref.dtype)
        c_out_ref[bt] = cell.astype(c_out_ref.dtype)


def _pick_batch_tile(B, Kp, M, C_hid, vmem_budget_bytes=8 * 1024 * 1024):
    """Largest divisor of B (capped at 8) whose double-buffered blocks stay
    well under a conservative VMEM budget (safe even for v7x's 64 MiB)."""
    per_image = Kp * M * 2 + 3 * C_hid * M * 4   # col (bf16) + cell + 2 outputs (f32)
    bt = 1
    for cand in range(1, min(B, 8) + 1):
        if B % cand == 0 and 2 * cand * per_image <= vmem_budget_bytes:
            bt = cand
    return bt


def convlstm_forward(x_nchw, prev_hidden_nchw, prev_cell_nchw, weight_oihw, bias):
    """ConvLSTM cell forward (kernel=3, stride=1, pad=1). NCHW in, NCHW out."""
    B, C_in, H, W = x_nchw.shape
    C_hid = prev_hidden_nchw.shape[1]
    C_tot = C_in + C_hid
    M = H * W
    K = 9 * C_tot
    Kp = ((K + 127) // 128) * 128          # lane-dense, zero-padded contraction dim

    compute_dtype = jnp.bfloat16           # MXU operand dtype (accumulation stays f32)

    # ---- wrapper-side glue (plain JAX / XLA) --------------------------------
    # Channels-first im2col: col[b, t*C_tot + i, y*W + x] = pad[b, i, y+dy, x+dx]
    # with t = dy*3 + dx.  Doing the tap gather once here keeps the kernel a
    # single large-K, lane-dense matmul and keeps all I/O NCHW-native.
    stacked = jnp.concatenate([x_nchw, prev_hidden_nchw], axis=1)        # (B, C_tot, H, W)
    padded = jnp.pad(stacked, ((0, 0), (0, 0), (1, 1), (1, 1)))          # conv padding=1
    taps = [padded[:, :, dy:dy + H, dx:dx + W]
            for dy in range(3) for dx in range(3)]
    col = jnp.stack(taps, axis=1).reshape(B, K, M).astype(compute_dtype)
    col = jnp.pad(col, ((0, 0), (0, Kp - K), (0, 0)))                    # K -> Kp (zeros)

    # Conv weight OIHW -> (4*C_hid, 9*C_tot) matching the (dy, dx, i) tap order.
    w2 = jnp.transpose(weight_oihw, (0, 2, 3, 1)).reshape(4 * C_hid, K)
    w2 = jnp.pad(w2.astype(compute_dtype), ((0, 0), (0, Kp - K)))
    bias_col = bias.reshape(4 * C_hid, 1).astype(jnp.float32)

    c_flat = prev_cell_nchw.reshape(B, C_hid, M).astype(jnp.float32)     # free reshape

    # ---- pallas call --------------------------------------------------------
    Bt = _pick_batch_tile(B, Kp, M, C_hid)
    grid = (B // Bt,)

    grid_spec = pltpu.PrefetchScalarGridSpec(
        num_scalar_prefetch=0,
        grid=grid,
        in_specs=[
            pl.BlockSpec((Bt, Kp, M), lambda g: (g, 0, 0)),
            pl.BlockSpec((4 * C_hid, Kp), lambda g: (0, 0)),
            pl.BlockSpec((4 * C_hid, 1), lambda g: (0, 0)),
            pl.BlockSpec((Bt, C_hid, M), lambda g: (g, 0, 0)),
        ],
        out_specs=[
            pl.BlockSpec((Bt, C_hid, M), lambda g: (g, 0, 0)),
            pl.BlockSpec((Bt, C_hid, M), lambda g: (g, 0, 0)),
        ],
    )

    out_shape = (jax.ShapeDtypeStruct((B, C_hid, M), jnp.float32),
                 jax.ShapeDtypeStruct((B, C_hid, M), jnp.float32))

    hidden_flat, cell_flat = pl.pallas_call(
        convlstm_kernel,
        out_shape=out_shape,
        grid_spec=grid_spec,
        compiler_params=pltpu.CompilerParams(
            dimension_semantics=("parallel",)),
    )(col, w2, bias_col, c_flat)

    # (B, C_hid, H*W) -> (B, C_hid, H, W): pure reshape, no data movement.
    return (hidden_flat.reshape(B, C_hid, H, W),
            cell_flat.reshape(B, C_hid, H, W))


def _reference_forward(x_nchw, h_nchw, c_nchw, weight_oihw, bias_vec):
    """Pure-JAX f32 reference (XLA conv) for correctness checks."""
    stacked = jnp.concatenate([x_nchw, h_nchw], axis=1)
    gates = jax.lax.conv_general_dilated(
        stacked, weight_oihw, window_strides=(1, 1), padding=((1, 1), (1, 1)),
        dimension_numbers=("NCHW", "OIHW", "NCHW"),
        precision=jax.lax.Precision.HIGHEST)
    gates = gates + bias_vec[None, :, None, None]
    in_g, rem_g, out_g, cell_g = jnp.split(gates, 4, axis=1)
    in_g, rem_g, out_g = map(jax.nn.sigmoid, (in_g, rem_g, out_g))
    cell_g = jnp.tanh(cell_g)
    cell = rem_g * c_nchw + in_g * cell_g
    hidden = out_g * jnp.tanh(cell)
    return hidden, cell


if __name__ == "__main__":
    # Small shapes consistent with the module's forward.
    B, C_in, H, W = 2, 4, 16, 16
    C_hid = 32
    C_tot = C_in + C_hid
    kH = kW = 3

    key = jax.random.PRNGKey(0)
    k_x, k_h, k_c, k_w = jax.random.split(key, 4)

    x = jax.random.normal(k_x, (B, C_in, H, W), dtype=jnp.float32)
    prev_hidden = jax.random.normal(k_h, (B, C_hid, H, W), dtype=jnp.float32)
    prev_cell = jax.random.normal(k_c, (B, C_hid, H, W), dtype=jnp.float32)

    # Deterministic parameter init mirroring the module's __init__:
    #   bias = 0, weight = xavier_normal_ on Conv2d(C_tot, 4*C_hid, 3x3).
    fan_in = C_tot * kH * kW
    fan_out = 4 * C_hid * kH * kW
    xavier_std = (2.0 / (fan_in + fan_out)) ** 0.5
    weight = xavier_std * jax.random.normal(
        k_w, (4 * C_hid, C_tot, kH, kW), dtype=jnp.float32)  # OIHW
    bias = jnp.zeros((4 * C_hid,), dtype=jnp.float32)

    hidden, cell = convlstm_forward(x, prev_hidden, prev_cell, weight, bias)
    hidden, cell = jax.block_until_ready((hidden, cell))
    assert hidden.shape == (B, C_hid, H, W) and cell.shape == (B, C_hid, H, W)

    # Tight check: f32 reference fed the SAME bf16-rounded activations/weights
    # the kernel's MXU consumes (isolates the kernel math from the bf16 cast).
    def q(a):
        return a.astype(jnp.bfloat16).astype(jnp.float32)

    ref_h_q, ref_c_q = _reference_forward(q(x), q(prev_hidden), prev_cell,
                                          q(weight), bias)
    assert bool(jnp.allclose(hidden, ref_h_q, rtol=5e-3, atol=5e-3))
    assert bool(jnp.allclose(cell, ref_c_q, rtol=5e-3, atol=5e-3))

    # Loose check against the full-f32 module semantics (the one-time bf16
    # operand cast is the only approximation; f32 accumulation bounds error).
    ref_h, ref_c = _reference_forward(x, prev_hidden, prev_cell, weight, bias)
    assert bool(jnp.allclose(hidden, ref_h, rtol=5e-2, atol=5e-2))
    assert bool(jnp.allclose(cell, ref_c, rtol=5e-2, atol=5e-2))

    print("KERNEL_OK")
</pallas_src>

<mosaic_0001>
module attributes {stable_mosaic.version = 11 : i64} {
  func.func @convlstm_kernel(%arg0: i32, %arg1: memref<2x384x256xbf16, #tpu.memory_space<vmem>>, %arg2: memref<128x384xbf16, #tpu.memory_space<vmem>>, %arg3: memref<128x1xf32, #tpu.memory_space<vmem>>, %arg4: memref<2x32x256xf32, #tpu.memory_space<vmem>>, %arg5: memref<2x32x256xf32, #tpu.memory_space<vmem>>, %arg6: memref<2x32x256xf32, #tpu.memory_space<vmem>>) attributes {dimension_semantics = [#tpu.dimension_semantics<parallel>], iteration_bounds = array<i64: 1>, scalar_prefetch = 0 : i64, scratch_operands = 0 : i64, tpu.core_type = #tpu.core_type<tc>, window_params = [{transform_indices = @transform_0, window_bounds = array<i64: 2, 384, 256>}, {pipeline_mode = #tpu.pipeline_mode<synchronous>, transform_indices = @transform_1, window_bounds = array<i64: 128, 384>}, {pipeline_mode = #tpu.pipeline_mode<synchronous>, transform_indices = @transform_2, window_bounds = array<i64: 128, 1>}, {transform_indices = @transform_3, window_bounds = array<i64: 2, 32, 256>}, {transform_indices = @transform_4, window_bounds = array<i64: 2, 32, 256>}, {transform_indices = @transform_5, window_bounds = array<i64: 2, 32, 256>}]} {
    %c0 = arith.constant 0 : index
    %c0_0 = arith.constant 0 : index
    %0 = vector.load %arg2[%c0, %c0_0] : memref<128x384xbf16, #tpu.memory_space<vmem>>, vector<128x384xbf16>
    %c0_1 = arith.constant 0 : index
    %c0_2 = arith.constant 0 : index
    %1 = vector.load %arg3[%c0_1, %c0_2] : memref<128x1xf32, #tpu.memory_space<vmem>>, vector<128x1xf32>
    %c0_3 = arith.constant 0 : index
    %c0_4 = arith.constant 0 : index
    %c0_5 = arith.constant 0 : index
    %2 = vector.load %arg1[%c0_3, %c0_4, %c0_5] : memref<2x384x256xbf16, #tpu.memory_space<vmem>>, vector<1x384x256xbf16>
    %3 = vector.shape_cast %2 : vector<1x384x256xbf16> to vector<384x256xbf16>
    %cst = arith.constant dense<0.000000e+00> : vector<128x256xf32>
    %4 = tpu.matmul %0, %3, %cst {dimension_numbers = #tpu.dot_dimension_numbers<[1], [0], [0], [1], [0, 0, 1, 1], [], []>} : vector<128x384xbf16>, vector<384x256xbf16>, vector<128x256xf32> -> vector<128x256xf32>
    %5 = vector.broadcast %1 : vector<128x1xf32> to vector<128x256xf32>
    %6 = arith.addf %4, %5 : vector<128x256xf32>
    %7 = vector.extract_strided_slice %6 {offsets = [0, 0], sizes = [96, 256], strides = [1, 1]} : vector<128x256xf32> to vector<96x256xf32>
    %8 = arith.negf %7 : vector<96x256xf32>
    %9 = math.exp %8 : vector<96x256xf32>
    %cst_6 = arith.constant 1.000000e+00 : f32
    %10 = vector.broadcast %cst_6 : f32 to vector<96x256xf32>
    %11 = arith.addf %10, %9 : vector<96x256xf32>
    %12 = arith.divf %10, %11 : vector<96x256xf32>
    %13 = vector.extract_strided_slice %12 {offsets = [0, 0], sizes = [32, 256], strides = [1, 1]} : vector<96x256xf32> to vector<32x256xf32>
    %14 = vector.extract_strided_slice %12 {offsets = [32, 0], sizes = [32, 256], strides = [1, 1]} : vector<96x256xf32> to vector<32x256xf32>
    %15 = vector.extract_strided_slice %12 {offsets = [64, 0], sizes = [32, 256], strides = [1, 1]} : vector<96x256xf32> to vector<32x256xf32>
    %16 = vector.extract_strided_slice %6 {offsets = [96, 0], sizes = [32, 256], strides = [1, 1]} : vector<128x256xf32> to vector<32x256xf32>
    %17 = math.tanh %16 : vector<32x256xf32>
    %c0_7 = arith.constant 0 : index
    %c0_8 = arith.constant 0 : index
    %c0_9 = arith.constant 0 : index
    %18 = vector.load %arg4[%c0_7, %c0_8, %c0_9] : memref<2x32x256xf32, #tpu.memory_space<vmem>>, vector<1x32x256xf32>
    %19 = vector.shape_cast %18 : vector<1x32x256xf32> to vector<32x256xf32>
    %20 = arith.mulf %14, %19 : vector<32x256xf32>
    %21 = arith.mulf %13, %17 : vector<32x256xf32>
    %22 = arith.addf %20, %21 : vector<32x256xf32>
    %23 = math.tanh %22 : vector<32x256xf32>
    %24 = arith.mulf %15, %23 : vector<32x256xf32>
    %c0_10 = arith.constant 0 : index
    %c0_11 = arith.constant 0 : index
    %c0_12 = arith.constant 0 : index
    %25 = vector.load %arg5[%c0_10, %c0_11, %c0_12] : memref<2x32x256xf32, #tpu.memory_space<vmem>>, vector<1x32x256xf32>
    %26 = vector.shape_cast %25 : vector<1x32x256xf32> to vector<32x256xf32>
    %27 = vector.shape_cast %24 : vector<32x256xf32> to vector<1x32x256xf32>
    tpu.vector_store %arg5[%c0_10, %c0_11, %c0_12], %27 {strides = array<i32>} : memref<2x32x256xf32, #tpu.memory_space<vmem>>, vector<1x32x256xf32>,
    %c0_13 = arith.constant 0 : index
    %c0_14 = arith.constant 0 : index
    %c0_15 = arith.constant 0 : index
    %28 = vector.load %arg6[%c0_13, %c0_14, %c0_15] : memref<2x32x256xf32, #tpu.memory_space<vmem>>, vector<1x32x256xf32>
    %29 = vector.shape_cast %28 : vector<1x32x256xf32> to vector<32x256xf32>
    %30 = vector.shape_cast %22 : vector<32x256xf32> to vector<1x32x256xf32>
    tpu.vector_store %arg6[%c0_13, %c0_14, %c0_15], %30 {strides = array<i32>} : memref<2x32x256xf32, #tpu.memory_space<vmem>>, vector<1x32x256xf32>,
    %c1 = arith.constant 1 : index
    %c0_16 = arith.constant 0 : index
    %c0_17 = arith.constant 0 : index
    %31 = vector.load %arg1[%c1, %c0_16, %c0_17] : memref<2x384x256xbf16, #tpu.memory_space<vmem>>, vector<1x384x256xbf16>
    %32 = vector.shape_cast %31 : vector<1x384x256xbf16> to vector<384x256xbf16>
    %cst_18 = arith.constant dense<0.000000e+00> : vector<128x256xf32>
    %33 = tpu.matmul %0, %32, %cst_18 {dimension_numbers = #tpu.dot_dimension_numbers<[1], [0], [0], [1], [0, 0, 1, 1], [], []>} : vector<128x384xbf16>, vector<384x256xbf16>, vector<128x256xf32> -> vector<128x256xf32>
    %34 = vector.broadcast %1 : vector<128x1xf32> to vector<128x256xf32>
    %35 = arith.addf %33, %34 : vector<128x256xf32>
    %36 = vector.extract_strided_slice %35 {offsets = [0, 0], sizes = [96, 256], strides = [1, 1]} : vector<128x256xf32> to vector<96x256xf32>
    %37 = arith.negf %36 : vector<96x256xf32>
    %38 = math.exp %37 : vector<96x256xf32>
    %cst_19 = arith.constant 1.000000e+00 : f32
    %39 = vector.broadcast %cst_19 : f32 to vector<96x256xf32>
    %40 = arith.addf %39, %38 : vector<96x256xf32>
    %41 = arith.divf %39, %40 : vector<96x256xf32>
    %42 = vector.extract_strided_slice %41 {offsets = [0, 0], sizes = [32, 256], strides = [1, 1]} : vector<96x256xf32> to vector<32x256xf32>
    %43 = vector.extract_strided_slice %41 {offsets = [32, 0], sizes = [32, 256], strides = [1, 1]} : vector<96x256xf32> to vector<32x256xf32>
    %44 = vector.extract_strided_slice %41 {offsets = [64, 0], sizes = [32, 256], strides = [1, 1]} : vector<96x256xf32> to vector<32x256xf32>
    %45 = vector.extract_strided_slice %35 {offsets = [96, 0], sizes = [32, 256], strides = [1, 1]} : vector<128x256xf32> to vector<32x256xf32>
    %46 = math.tanh %45 : vector<32x256xf32>
    %c1_20 = arith.constant 1 : index
    %c0_21 = arith.constant 0 : index
    %c0_22 = arith.constant 0 : index
    %47 = vector.load %arg4[%c1_20, %c0_21, %c0_22] : memref<2x32x256xf32, #tpu.memory_space<vmem>>, vector<1x32x256xf32>
    %48 = vector.shape_cast %47 : vector<1x32x256xf32> to vector<32x256xf32>
    %49 = arith.mulf %43, %48 : vector<32x256xf32>
    %50 = arith.mulf %42, %46 : vector<32x256xf32>
    %51 = arith.addf %49, %50 : vector<32x256xf32>
    %52 = math.tanh %51 : vector<32x256xf32>
    %53 = arith.mulf %44, %52 : vector<32x256xf32>
    %c1_23 = arith.constant 1 : index
    %c0_24 = arith.constant 0 : index
    %c0_25 = arith.constant 0 : index
    %54 = vector.load %arg5[%c1_23, %c0_24, %c0_25] : memref<2x32x256xf32, #tpu.memory_space<vmem>>, vector<1x32x256xf32>
    %55 = vector.shape_cast %54 : vector<1x32x256xf32> to vector<32x256xf32>
    %56 = vector.shape_cast %53 : vector<32x256xf32> to vector<1x32x256xf32>
    tpu.vector_store %arg5[%c1_23, %c0_24, %c0_25], %56 {strides = array<i32>} : memref<2x32x256xf32, #tpu.memory_space<vmem>>, vector<1x32x256xf32>,
    %c1_26 = arith.constant 1 : index
    %c0_27 = arith.constant 0 : index
    %c0_28 = arith.constant 0 : index
    %57 = vector.load %arg6[%c1_26, %c0_27, %c0_28] : memref<2x32x256xf32, #tpu.memory_space<vmem>>, vector<1x32x256xf32>
    %58 = vector.shape_cast %57 : vector<1x32x256xf32> to vector<32x256xf32>
    %59 = vector.shape_cast %51 : vector<32x256xf32> to vector<1x32x256xf32>
    tpu.vector_store %arg6[%c1_26, %c0_27, %c0_28], %59 {strides = array<i32>} : memref<2x32x256xf32, #tpu.memory_space<vmem>>, vector<1x32x256xf32>,
    return
  }
  func.func @transform_0(%arg0: i32) -> (i32, i32, i32) {
    %c0_i32 = arith.constant 0 : i32
    %c0_i32_0 = arith.constant 0 : i32
    %c0_i32_1 = arith.constant 0 : i32
    return %arg0, %c0_i32, %c0_i32_0 : i32, i32, i32
  }
  func.func @transform_1(%arg0: i32) -> (i32, i32) {
    %c0_i32 = arith.constant 0 : i32
    %c0_i32_0 = arith.constant 0 : i32
    %c0_i32_1 = arith.constant 0 : i32
    return %c0_i32, %c0_i32_0 : i32, i32
  }
  func.func @transform_2(%arg0: i32) -> (i32, i32) {
    %c0_i32 = arith.constant 0 : i32
    %c0_i32_0 = arith.constant 0 : i32
    %c0_i32_1 = arith.constant 0 : i32
    return %c0_i32, %c0_i32_0 : i32, i32
  }
  func.func @transform_3(%arg0: i32) -> (i32, i32, i32) {
    %c0_i32 = arith.constant 0 : i32
    %c0_i32_0 = arith.constant 0 : i32
    %c0_i32_1 = arith.constant 0 : i32
    return %arg0, %c0_i32, %c0_i32_0 : i32, i32, i32
  }
  func.func @transform_4(%arg0: i32) -> (i32, i32, i32) {
    %c0_i32 = arith.constant 0 : i32
    %c0_i32_0 = arith.constant 0 : i32
    %c0_i32_1 = arith.constant 0 : i32
    return %arg0, %c0_i32, %c0_i32_0 : i32, i32, i32
  }
  func.func @transform_5(%arg0: i32) -> (i32, i32, i32) {
    %c0_i32 = arith.constant 0 : i32
    %c0_i32_0 = arith.constant 0 : i32
    %c0_i32_1 = arith.constant 0 : i32
    return %arg0, %c0_i32, %c0_i32_0 : i32, i32, i32
  }
}

</mosaic_0001>

<llo_original>
// kernel: tpu_custom_call.1
$region0: #{tpu_custom_call.1}
  #allocation0 [shape = 'u32[]', space=smem, size = 0x4, offset = 0x4, fixed_abs, tag = 'smem constant byte address 0x4 - core index']
  #allocation1 [shape = 'u32[144,128]{1,0:T(1,128)}', space=vmem, size = 0x12000, scoped, tag = 'internal scratch']
  %s0 = inlined_call_operand.hbm [shape: bf16[2,384,256], index: 0, kind: input, shape index: {}]
  %s1 = inlined_call_operand.hbm [shape: bf16[128,384], index: 1, kind: input, shape index: {}]
  %s2 = inlined_call_operand.vmem [shape: f32[128,1], index: 2, kind: input, shape index: {}]
  %s3 = inlined_call_operand.vmem [shape: f32[2,32,256], index: 3, kind: input, shape index: {}]
  %s4 = inlined_call_operand.hbm [shape: f32[2,32,256], index: 4, kind: output, shape index: {0}]
  %s5 = inlined_call_operand.hbm [shape: f32[2,32,256], index: 5, kind: output, shape index: {1}]
  %6 = xla_tuple %s4, %s5
  %s7 = sld [smem:[#allocation0]]
  $region42: #{tpu_custom_call.1} parent=0
    _
  %s9 = ssub.s32 1, %s7
  %s10 = scalar_select 0, %s9, %s7
  $region1: #{tpu_custom_call.1} parent=0
    #allocation2 [shape = 'u8[393216]{0}', space=vmem, size = 0x60000, scoped, tag = 'input window, operand 0, single buffered']
    #allocation3 [shape = 's32[1]{0}', space=sflag, size = 0x4, scoped, tag = 'scoped memory for tpu_custom_call.1']
    #allocation4 [shape = 's32[1]{0}', space=sflag, size = 0x4, scoped, tag = 'scoped memory for tpu_custom_call.1']
    #allocation5 [shape = 'u8[98304]{0}', space=vmem, size = 0x18000, scoped, tag = 'input window, operand 1, single buffered']
    #allocation6 [shape = 's32[1]{0}', space=sflag, size = 0x4, scoped, tag = 'scoped memory for tpu_custom_call.1']
    #allocation7 [shape = 'u8[65536]{0}', space=vmem, size = 0x10000, scoped, tag = 'output window, operand 0, single buffered']
    #allocation8 [shape = 'u8[65536]{0}', space=vmem, size = 0x10000, scoped, tag = 'output window, operand 1, single buffered']
    #allocation9 [shape = 's32[1]{0}', space=sflag, size = 0x4, scoped, tag = 'scoped memory for tpu_custom_call.1']
    %11 = vsyncpa [#allocation3], 0
    %12 = vsyncpa [#allocation6], 0
    %13 = vsyncpa [#allocation4], 0
    %14 = vsyncpa [#allocation9], 0
    // Predicated region
    $region2: #{tpu_custom_call.1} parent=1 // pred_check
      _
    $region3: #{tpu_custom_call.1} parent=1 // pred_check_branch
      %16 = sbr.rel (0) target = $region5
    $region4: #{tpu_custom_call.1} parent=1 // pred_region
      %s18 = ssub.s32 12288, 12288
      %19 = vsyncadd [#allocation3], %s18
      %s20 = sshll.u32 [#allocation2], 4
      %s21 = int_to_ptr.vmem [resolvable:$true] %s20
      %26 = dma.hbm_to_vmem [thread:$0]  %s0, 12288, %s21, [#allocation3], 128, 128, 8
    $region5: #{tpu_custom_call.1} parent=1 // pred_fallthru
      _
    // Predicated region
    $region6: #{tpu_custom_call.1} parent=1 // pred_check
      _
    $region7: #{tpu_custom_call.1} parent=1 // pred_check_branch
      %28 = sbr.rel (0) target = $region9
    $region8: #{tpu_custom_call.1} parent=1 // pred_region
      %s30 = ssub.s32 3072, 3072
      %31 = vsyncadd [#allocation6], %s30
      %s32 = sshll.u32 [#allocation5], 4
      %s33 = int_to_ptr.vmem [resolvable:$true] %s32
      %38 = dma.hbm_to_vmem [thread:$0]  %s1, 3072, %s33, [#allocation6], 192, 192, 12
    $region9: #{tpu_custom_call.1} parent=1 // pred_fallthru
      _
    // Predicated region
    $region10: #{tpu_custom_call.1} parent=1 // pred_check
      _
    $region11: #{tpu_custom_call.1} parent=1 // pred_check_branch
      %40 = sbr.rel (0) target = $region13
    $region12: #{tpu_custom_call.1} parent=1 // pred_region
      _
    $region13: #{tpu_custom_call.1} parent=1 // pred_fallthru
      _
    // Predicated region
    $region14: #{tpu_custom_call.1} parent=1 // pred_check
      _
    $region15: #{tpu_custom_call.1} parent=1 // pred_check_branch
      %42 = sbr.rel (0) target = $region17
    $region16: #{tpu_custom_call.1} parent=1 // pred_region
      _
    $region17: #{tpu_custom_call.1} parent=1 // pred_fallthru
      _
    // Predicated region
    $region18: #{tpu_custom_call.1} parent=1 // pred_check
      _
    $region19: #{tpu_custom_call.1} parent=1 // pred_check_branch
      %44 = sbr.rel (0) target = $region21
    $region20: #{tpu_custom_call.1} parent=1 // pred_region
      %45 = dma.done [#allocation3], 12288
    $region21: #{tpu_custom_call.1} parent=1 // pred_fallthru
      _
    // Predicated region
    $region22: #{tpu_custom_call.1} parent=1 // pred_check
      _
    $region23: #{tpu_custom_call.1} parent=1 // pred_check_branch
      %47 = sbr.rel (0) target = $region25
    $region24: #{tpu_custom_call.1} parent=1 // pred_region
      %48 = dma.done [#allocation6], 3072
    $region25: #{tpu_custom_call.1} parent=1 // pred_fallthru
      _
    %v50 = vld [vmem:[#allocation5] sm:$0xff]
    %v51 = vld [vmem:[#allocation5 + $0x8] sm:$0xf]
    %v52 = vld [vmem:[#allocation5 + $0xc] sm:$0xff]
    %v53 = vld [vmem:[#allocation5 + $0x14] sm:$0xf]
    %v54 = vld [vmem:[#allocation5 + $0x18] sm:$0xff]
    %v55 = vld [vmem:[#allocation5 + $0x20] sm:$0xf]
    %v56 = vld [vmem:[#allocation5 + $0x24] sm:$0xff]
    %v57 = vld [vmem:[#allocation5 + $0x2c] sm:$0xf]
    %v58 = vld [vmem:[#allocation5 + $0x30] sm:$0xff]
    %v59 = vld [vmem:[#allocation5 + $0x38] sm:$0xf]
    %v60 = vld [vmem:[#allocation5 + $0x3c] sm:$0xff]
    %v61 = vld [vmem:[#allocation5 + $0x44] sm:$0xf]
    %v62 = vld [vmem:[#allocation5 + $0x48] sm:$0xff]
    %v63 = vld [vmem:[#allocation5 + $0x50] sm:$0xf]
    %v64 = vld [vmem:[#allocation5 + $0x54] sm:$0xff]
    %v65 = vld [vmem:[#allocation5 + $0x5c] sm:$0xf]
    %v66 = vld [vmem:[#allocation5 + $0x60] sm:$0xff]
    %v67 = vld [vmem:[#allocation5 + $0x68] sm:$0xf]
    %v68 = vld [vmem:[#allocation5 + $0x6c] sm:$0xff]
    %v69 = vld [vmem:[#allocation5 + $0x74] sm:$0xf]
    %v70 = vld [vmem:[#allocation5 + $0x78] sm:$0xff]
    %v71 = vld [vmem:[#allocation5 + $0x80] sm:$0xf]
    %v72 = vld [vmem:[#allocation5 + $0x84] sm:$0xff]
    %v73 = vld [vmem:[#allocation5 + $0x8c] sm:$0xf]
    %v74 = vld [vmem:[#allocation5 + $0x90] sm:$0xff]
    %v75 = vld [vmem:[#allocation5 + $0x98] sm:$0xf]
    %v76 = vld [vmem:[#allocation5 + $0x9c] sm:$0xff]
    %v77 = vld [vmem:[#allocation5 + $0xa4] sm:$0xf]
    %v78 = vld [vmem:[#allocation5 + $0xa8] sm:$0xff]
    %v79 = vld [vmem:[#allocation5 + $0xb0] sm:$0xf]
    %v80 = vld [vmem:[#allocation5 + $0xb4] sm:$0xff]
    %v81 = vld [vmem:[#allocation5 + $0xbc] sm:$0xf]
    %v82 = vld [vmem:[%s2] sm:$0xff]
    %v83 = vld [vmem:[%s2 + $0x8] sm:$0xff]
    %v84 = vld [vmem:[%s2 + $0x10] sm:$0xff]
    %v85 = vld [vmem:[%s2 + $0x18] sm:$0xff]
    %v86 = vld [vmem:[%s2 + $0x20] sm:$0xff]
    %v87 = vld [vmem:[%s2 + $0x28] sm:$0xff]
    %v88 = vld [vmem:[%s2 + $0x30] sm:$0xff]
    %v89 = vld [vmem:[%s2 + $0x38] sm:$0xff]
    %v90 = vld [vmem:[%s2 + $0x40] sm:$0xff]
    %v91 = vld [vmem:[%s2 + $0x48] sm:$0xff]
    %v92 = vld [vmem:[%s2 + $0x50] sm:$0xff]
    %v93 = vld [vmem:[%s2 + $0x58] sm:$0xff]
    %v94 = vld [vmem:[%s2 + $0x60] sm:$0xff]
    %v95 = vld [vmem:[%s2 + $0x68] sm:$0xff]
    %v96 = vld [vmem:[%s2 + $0x70] sm:$0xff]
    %v97 = vld [vmem:[%s2 + $0x78] sm:$0xff]
    %v98 = vld [vmem:[#allocation2] sm:$0xff]
    %v99 = vld [vmem:[#allocation2 + $0x8] sm:$0xff]
    %v100 = vld [vmem:[#allocation2 + $0x10] sm:$0xff]
    %v101 = vld [vmem:[#allocation2 + $0x18] sm:$0xff]
    %v102 = vld [vmem:[#allocation2 + $0x20] sm:$0xff]
    %v103 = vld [vmem:[#allocation2 + $0x28] sm:$0xff]
    %v104 = vld [vmem:[#allocation2 + $0x30] sm:$0xff]
    %v105 = vld [vmem:[#allocation2 + $0x38] sm:$0xff]
    %v106 = vld [vmem:[#allocation2 + $0x40] sm:$0xff]
    %v107 = vld [vmem:[#allocation2 + $0x48] sm:$0xff]
    %v108 = vld [vmem:[#allocation2 + $0x50] sm:$0xff]
    %v109 = vld [vmem:[#allocation2 + $0x58] sm:$0xff]
    %v110 = vld [vmem:[#allocation2 + $0x60] sm:$0xff]
    %v111 = vld [vmem:[#allocation2 + $0x68] sm:$0xff]
    %v112 = vld [vmem:[#allocation2 + $0x70] sm:$0xff]
    %v113 = vld [vmem:[#allocation2 + $0x78] sm:$0xff]
    %v114 = vld [vmem:[#allocation2 + $0x80] sm:$0xff]
    %v115 = vld [vmem:[#allocation2 + $0x88] sm:$0xff]
    %v116 = vld [vmem:[#allocation2 + $0x90] sm:$0xff]
    %v117 = vld [vmem:[#allocation2 + $0x98] sm:$0xff]
    %v118 = vld [vmem:[#allocation2 + $0xa0] sm:$0xff]
    %v119 = vld [vmem:[#allocation2 + $0xa8] sm:$0xff]
    %v120 = vld [vmem:[#allocation2 + $0xb0] sm:$0xff]
    %v121 = vld [vmem:[#allocation2 + $0xb8] sm:$0xff]
    %v122 = vld [vmem:[#allocation2 + $0xc0] sm:$0xff]
    %v123 = vld [vmem:[#allocation2 + $0xc8] sm:$0xff]
    %v124 = vld [vmem:[#allocation2 + $0xd0] sm:$0xff]
    %v125 = vld [vmem:[#allocation2 + $0xd8] sm:$0xff]
    %v126 = vld [vmem:[#allocation2 + $0xe0] sm:$0xff]
    %v127 = vld [vmem:[#allocation2 + $0xe8] sm:$0xff]
    %v128 = vld [vmem:[#allocation2 + $0xf0] sm:$0xff]
    %v129 = vld [vmem:[#allocation2 + $0xf8] sm:$0xff]
    %v130 = vld [vmem:[#allocation2 + $0x100] sm:$0xff]
    %v131 = vld [vmem:[#allocation2 + $0x108] sm:$0xff]
    %v132 = vld [vmem:[#allocation2 + $0x110] sm:$0xff]
    %v133 = vld [vmem:[#allocation2 + $0x118] sm:$0xff]
    %v134 = vld [vmem:[#allocation2 + $0x120] sm:$0xff]
    %v135 = vld [vmem:[#allocation2 + $0x128] sm:$0xff]
    %v136 = vld [vmem:[#allocation2 + $0x130] sm:$0xff]
    %v137 = vld [vmem:[#allocation2 + $0x138] sm:$0xff]
    %v138 = vld [vmem:[#allocation2 + $0x140] sm:$0xff]
    %v139 = vld [vmem:[#allocation2 + $0x148] sm:$0xff]
    %v140 = vld [vmem:[#allocation2 + $0x150] sm:$0xff]
    %v141 = vld [vmem:[#allocation2 + $0x158] sm:$0xff]
    %v142 = vld [vmem:[#allocation2 + $0x160] sm:$0xff]
    %v143 = vld [vmem:[#allocation2 + $0x168] sm:$0xff]
    %v144 = vld [vmem:[#allocation2 + $0x170] sm:$0xff]
    %v145 = vld [vmem:[#allocation2 + $0x178] sm:$0xff]
    %147 = vset.pattern.permute.xlu0 0
    %148 = vperm.xlu0 %147, %v82
    %v149 = vpop.permute.xlu0 %148
    %152 = vset.pattern.permute.xlu0 0
    %153 = vperm.xlu0 %152, %v83
    %v154 = vpop.permute.xlu0 %153
    %157 = vset.pattern.permute.xlu0 0
    %158 = vperm.xlu0 %157, %v84
    %v159 = vpop.permute.xlu0 %158
    %162 = vset.pattern.permute.xlu0 0
    %163 = vperm.xlu0 %162, %v85
    %v164 = vpop.permute.xlu0 %163
    %167 = vset.pattern.permute.xlu0 0
    %168 = vperm.xlu0 %167, %v86
    %v169 = vpop.permute.xlu0 %168
    %172 = vset.pattern.permute.xlu0 0
    %173 = vperm.xlu0 %172, %v87
    %v174 = vpop.permute.xlu0 %173
    %177 = vset.pattern.permute.xlu0 0
    %178 = vperm.xlu0 %177, %v88
    %v179 = vpop.permute.xlu0 %178
    %182 = vset.pattern.permute.xlu0 0
    %183 = vperm.xlu0 %182, %v89
    %v184 = vpop.permute.xlu0 %183
    %187 = vset.pattern.permute.xlu0 0
    %188 = vperm.xlu0 %187, %v90
    %v189 = vpop.permute.xlu0 %188
    %192 = vset.pattern.permute.xlu0 0
    %193 = vperm.xlu0 %192, %v91
    %v194 = vpop.permute.xlu0 %193
    %197 = vset.pattern.permute.xlu0 0
    %198 = vperm.xlu0 %197, %v92
    %v199 = vpop.permute.xlu0 %198
    %202 = vset.pattern.permute.xlu0 0
    %203 = vperm.xlu0 %202, %v93
    %v204 = vpop.permute.xlu0 %203
    %207 = vset.pattern.permute.xlu0 0
    %208 = vperm.xlu0 %207, %v94
    %v209 = vpop.permute.xlu0 %208
    %212 = vset.pattern.permute.xlu0 0
    %213 = vperm.xlu0 %212, %v95
    %v214 = vpop.permute.xlu0 %213
    %217 = vset.pattern.permute.xlu0 0
    %218 = vperm.xlu0 %217, %v96
    %v219 = vpop.permute.xlu0 %218
    %222 = vset.pattern.permute.xlu0 0
    %223 = vperm.xlu0 %222, %v97
    %v224 = vpop.permute.xlu0 %223
    %v258 = vunpack.c.l.b16 %v50
    %v259 = vunpack.c.h.b16 %v50
    %v260 = vunpack.c.l.b16 %v51
    %v261 = vunpack.c.l.b16 %v52
    %v262 = vunpack.c.h.b16 %v52
    %v263 = vunpack.c.l.b16 %v53
    %v264 = vunpack.c.l.b16 %v54
    %v265 = vunpack.c.h.b16 %v54
    %v266 = vunpack.c.l.b16 %v55
    %v267 = vunpack.c.l.b16 %v56
    %v268 = vunpack.c.h.b16 %v56
    %v269 = vunpack.c.l.b16 %v57
    %v270 = vunpack.c.l.b16 %v58
    %v271 = vunpack.c.h.b16 %v58
    %v272 = vunpack.c.l.b16 %v59
    %v273 = vunpack.c.l.b16 %v60
    %v274 = vunpack.c.h.b16 %v60
    %v275 = vunpack.c.l.b16 %v61
    %v276 = vunpack.c.l.b16 %v62
    %v277 = vunpack.c.h.b16 %v62
    %v278 = vunpack.c.l.b16 %v63
    %v279 = vunpack.c.l.b16 %v64
    %v280 = vunpack.c.h.b16 %v64
    %v281 = vunpack.c.l.b16 %v65
    %v282 = vunpack.c.l.b16 %v66
    %v283 = vunpack.c.h.b16 %v66
    %v284 = vunpack.c.l.b16 %v67
    %v285 = vunpack.c.l.b16 %v68
    %v286 = vunpack.c.h.b16 %v68
    %v287 = vunpack.c.l.b16 %v69
    %v288 = vunpack.c.l.b16 %v70
    %v289 = vunpack.c.h.b16 %v70
    %v290 = vunpack.c.l.b16 %v71
    %v291 = vunpack.c.l.b16 %v72
    %v292 = vunpack.c.h.b16 %v72
    %v293 = vunpack.c.l.b16 %v73
    %v294 = vunpack.c.l.b16 %v74
    %v295 = vunpack.c.h.b16 %v74
    %v296 = vunpack.c.l.b16 %v75
    %v297 = vunpack.c.l.b16 %v76
    %v298 = vunpack.c.h.b16 %v76
    %v299 = vunpack.c.l.b16 %v77
    %v300 = vunpack.c.l.b16 %v78
    %v301 = vunpack.c.h.b16 %v78
    %v302 = vunpack.c.l.b16 %v79
    %v303 = vunpack.c.l.b16 %v80
    %v304 = vunpack.c.h.b16 %v80
    %v305 = vunpack.c.l.b16 %v81
    %v306 = vpack.c.b16 %v261, %v258
    %v307 = vpack.c.b16 %v262, %v259
    %v308 = vpack.c.b16 %v263, %v260
    %v309 = vpack.c.b16 %v267, %v264
    %v310 = vpack.c.b16 %v268, %v265
    %v311 = vpack.c.b16 %v269, %v266
    %v312 = vpack.c.b16 %v273, %v270
    %v313 = vpack.c.b16 %v274, %v271
    %v314 = vpack.c.b16 %v275, %v272
    %v315 = vpack.c.b16 %v279, %v276
    %v316 = vpack.c.b16 %v280, %v277
    %v317 = vpack.c.b16 %v281, %v278
    %v318 = vpack.c.b16 %v285, %v282
    %v319 = vpack.c.b16 %v286, %v283
    %v320 = vpack.c.b16 %v287, %v284
    %v321 = vpack.c.b16 %v291, %v288
    %v322 = vpack.c.b16 %v292, %v289
    %v323 = vpack.c.b16 %v293, %v290
    %v324 = vpack.c.b16 %v297, %v294
    %v325 = vpack.c.b16 %v298, %v295
    %v326 = vpack.c.b16 %v299, %v296
    %v327 = vpack.c.b16 %v303, %v300
    %v328 = vpack.c.b16 %v304, %v301
    %v329 = vpack.c.b16 %v305, %v302
    %v402 = vunpack.c.l.b16 %v98
    %v403 = vunpack.c.h.b16 %v98
    %v404 = vunpack.c.l.b16 %v99
    %v405 = vunpack.c.h.b16 %v99
    %v406 = vunpack.c.l.b16 %v100
    %v407 = vunpack.c.h.b16 %v100
    %v408 = vunpack.c.l.b16 %v101
    %v409 = vunpack.c.h.b16 %v101
    %v410 = vunpack.c.l.b16 %v102
    %v411 = vunpack.c.h.b16 %v102
    %v412 = vunpack.c.l.b16 %v103
    %v413 = vunpack.c.h.b16 %v103
    %v414 = vunpack.c.l.b16 %v104
    %v415 = vunpack.c.h.b16 %v104
    %v416 = vunpack.c.l.b16 %v105
    %v417 = vunpack.c.h.b16 %v105
    %v418 = vunpack.c.l.b16 %v106
    %v419 = vunpack.c.h.b16 %v106
    %v420 = vunpack.c.l.b16 %v107
    %v421 = vunpack.c.h.b16 %v107
    %v422 = vunpack.c.l.b16 %v108
    %v423 = vunpack.c.h.b16 %v108
    %v424 = vunpack.c.l.b16 %v109
    %v425 = vunpack.c.h.b16 %v109
    %v426 = vunpack.c.l.b16 %v110
    %v427 = vunpack.c.h.b16 %v110
    %v428 = vunpack.c.l.b16 %v111
    %v429 = vunpack.c.h.b16 %v111
    %v430 = vunpack.c.l.b16 %v112
    %v431 = vunpack.c.h.b16 %v112
    %v432 = vunpack.c.l.b16 %v113
    %v433 = vunpack.c.h.b16 %v113
    %v434 = vunpack.c.l.b16 %v114
    %v435 = vunpack.c.h.b16 %v114
    %v436 = vunpack.c.l.b16 %v115
    %v437 = vunpack.c.h.b16 %v115
    %v438 = vunpack.c.l.b16 %v116
    %v439 = vunpack.c.h.b16 %v116
    %v440 = vunpack.c.l.b16 %v117
    %v441 = vunpack.c.h.b16 %v117
    %v442 = vunpack.c.l.b16 %v118
    %v443 = vunpack.c.h.b16 %v118
    %v444 = vunpack.c.l.b16 %v119
    %v445 = vunpack.c.h.b16 %v119
    %v446 = vunpack.c.l.b16 %v120
    %v447 = vunpack.c.h.b16 %v120
    %v448 = vunpack.c.l.b16 %v121
    %v449 = vunpack.c.h.b16 %v121
    %v450 = vunpack.c.l.b16 %v122
    %v451 = vunpack.c.h.b16 %v122
    %v452 = vunpack.c.l.b16 %v123
    %v453 = vunpack.c.h.b16 %v123
    %v454 = vunpack.c.l.b16 %v124
    %v455 = vunpack.c.h.b16 %v124
    %v456 = vunpack.c.l.b16 %v125
    %v457 = vunpack.c.h.b16 %v125
    %v458 = vunpack.c.l.b16 %v126
    %v459 = vunpack.c.h.b16 %v126
    %v460 = vunpack.c.l.b16 %v127
    %v461 = vunpack.c.h.b16 %v127
    %v462 = vunpack.c.l.b16 %v128
    %v463 = vunpack.c.h.b16 %v128
    %v464 = vunpack.c.l.b16 %v129
    %v465 = vunpack.c.h.b16 %v129
    %v466 = vunpack.c.l.b16 %v130
    %v467 = vunpack.c.h.b16 %v130
    %v468 = vunpack.c.l.b16 %v131
    %v469 = vunpack.c.h.b16 %v131
    %v470 = vunpack.c.l.b16 %v132
    %v471 = vunpack.c.h.b16 %v132
    %v472 = vunpack.c.l.b16 %v133
    %v473 = vunpack.c.h.b16 %v133
    %v474 = vunpack.c.l.b16 %v134
    %v475 = vunpack.c.h.b16 %v134
    %v476 = vunpack.c.l.b16 %v135
    %v477 = vunpack.c.h.b16 %v135
    %v478 = vunpack.c.l.b16 %v136
    %v479 = vunpack.c.h.b16 %v136
    %v480 = vunpack.c.l.b16 %v137
    %v481 = vunpack.c.h.b16 %v137
    %v482 = vunpack.c.l.b16 %v138
    %v483 = vunpack.c.h.b16 %v138
    %v484 = vunpack.c.l.b16 %v139
    %v485 = vunpack.c.h.b16 %v139
    %v486 = vunpack.c.l.b16 %v140
    %v487 = vunpack.c.h.b16 %v140
    %v488 = vunpack.c.l.b16 %v141
    %v489 = vunpack.c.h.b16 %v141
    %v490 = vunpack.c.l.b16 %v142
    %v491 = vunpack.c.h.b16 %v142
    %v492 = vunpack.c.l.b16 %v143
    %v493 = vunpack.c.h.b16 %v143
    %v494 = vunpack.c.l.b16 %v144
    %v495 = vunpack.c.h.b16 %v144
    %v496 = vunpack.c.l.b16 %v145
    %v497 = vunpack.c.h.b16 %v145
    %v498 = vpack.c.b16 %v404, %v402
    %v499 = vpack.c.b16 %v405, %v403
    %v500 = vpack.c.b16 %v408, %v406
    %v501 = vpack.c.b16 %v409, %v407
    %v502 = vpack.c.b16 %v412, %v410
    %v503 = vpack.c.b16 %v413, %v411
    %v504 = vpack.c.b16 %v416, %v414
    %v505 = vpack.c.b16 %v417, %v415
    %v506 = vpack.c.b16 %v420, %v418
    %v507 = vpack.c.b16 %v421, %v419
    %v508 = vpack.c.b16 %v424, %v422
    %v509 = vpack.c.b16 %v425, %v423
    %v510 = vpack.c.b16 %v428, %v426
    %v511 = vpack.c.b16 %v429, %v427
    %v512 = vpack.c.b16 %v432, %v430
    %v513 = vpack.c.b16 %v433, %v431
    %v514 = vpack.c.b16 %v436, %v434
    %v515 = vpack.c.b16 %v437, %v435
    %v516 = vpack.c.b16 %v440, %v438
    %v517 = vpack.c.b16 %v441, %v439
    %v518 = vpack.c.b16 %v444, %v442
    %v519 = vpack.c.b16 %v445, %v443
    %v520 = vpack.c.b16 %v448, %v446
    %v521 = vpack.c.b16 %v449, %v447
    %v522 = vpack.c.b16 %v452, %v450
    %v523 = vpack.c.b16 %v453, %v451
    %v524 = vpack.c.b16 %v456, %v454
    %v525 = vpack.c.b16 %v457, %v455
    %v526 = vpack.c.b16 %v460, %v458
    %v527 = vpack.c.b16 %v461, %v459
    %v528 = vpack.c.b16 %v464, %v462
    %v529 = vpack.c.b16 %v465, %v463
    %v530 = vpack.c.b16 %v468, %v466
    %v531 = vpack.c.b16 %v469, %v467
    %v532 = vpack.c.b16 %v472, %v470
    %v533 = vpack.c.b16 %v473, %v471
    %v534 = vpack.c.b16 %v476, %v474
    %v535 = vpack.c.b16 %v477, %v475
    %v536 = vpack.c.b16 %v480, %v478
    %v537 = vpack.c.b16 %v481, %v479
    %v538 = vpack.c.b16 %v484, %v482
    %v539 = vpack.c.b16 %v485, %v483
    %v540 = vpack.c.b16 %v488, %v486
    %v541 = vpack.c.b16 %v489, %v487
    %v542 = vpack.c.b16 %v492, %v490
    %v543 = vpack.c.b16 %v493, %v491
    %v544 = vpack.c.b16 %v496, %v494
    %v545 = vpack.c.b16 %v497, %v495
    %594 = vmatprep.subr.bf16.mxu0 %v513
    %595 = vmatpush1.bf16.msra.mxu0 %v512
    %596 = vmatprep.subr.bf16.mxu0 %v511
    %597 = vmatpush1.bf16.msra.mxu0 %v510
    %598 = vmatprep.subr.bf16.mxu0 %v509
    %599 = vmatpush1.bf16.msra.mxu0 %v508
    %600 = vmatprep.subr.bf16.mxu0 %v507
    %601 = vmatpush1.bf16.msra.mxu0 %v506
    %602 = vmatprep.subr.bf16.mxu0 %v505
    %603 = vmatpush1.bf16.msra.mxu0 %v504
    %604 = vmatprep.subr.bf16.mxu0 %v503
    %605 = vmatpush1.bf16.msra.mxu0 %v502
    %606 = vmatprep.subr.bf16.mxu0 %v501
    %607 = vmatpush1.bf16.msra.mxu0 %v500
    %608 = vmatprep.subr.bf16.mxu0 %v499
    %609 = vmatpush1.bf16.msra.mxu0 %v498
    %610 = vmatprep.subr.bf16.mxu0 %v529
    %611 = vmatpush2.bf16.msra.mxu0 %v528
    %612 = vmatprep.subr.bf16.mxu0 %v527
    %613 = vmatpush2.bf16.msra.mxu0 %v526
    %614 = vmatprep.subr.bf16.mxu0 %v525
    %615 = vmatpush2.bf16.msra.mxu0 %v524
    %616 = vmatprep.subr.bf16.mxu0 %v523
    %617 = vmatpush2.bf16.msra.mxu0 %v522
    %618 = vmatprep.subr.bf16.mxu0 %v521
    %619 = vmatpush2.bf16.msra.mxu0 %v520
    %620 = vmatprep.subr.bf16.mxu0 %v519
    %621 = vmatpush2.bf16.msra.mxu0 %v518
    %622 = vmatprep.subr.bf16.mxu0 %v517
    %623 = vmatpush2.bf16.msra.mxu0 %v516
    %624 = vmatprep.subr.bf16.mxu0 %v515
    %625 = vmatpush2.bf16.msra.mxu0 %v514
    %626 = vmatprep.mubr.bf16.mxu0 %v307
    %627 = vmatmul.mubr.bf16.gmra.mxu0 %v306
    %v628 = vpop.f32.mrf.mxu0
    %v629 = vadd.f32 %v149, %v628
    %v630 = vpop.f32.mrf.mxu0
    %v631 = vadd.f32 %v149, %v630
    %v632 = vpop.f32.mrf.mxu0
    %v633 = vadd.f32 %v154, %v632
    %v634 = vpop.f32.mrf.mxu0
    %v635 = vadd.f32 %v154, %v634
    %636 = vmatprep.mubr.bf16.mxu0 %v310
    %637 = vmatmul.mubr.bf16.gmra.mxu0 %v309
    %v638 = vpop.f32.mrf.mxu0
    %v639 = vadd.f32 %v159, %v638
    %v640 = vpop.f32.mrf.mxu0
    %v641 = vadd.f32 %v159, %v640
    %v642 = vpop.f32.mrf.mxu0
    %v643 = vadd.f32 %v164, %v642
    %v644 = vpop.f32.mrf.mxu0
    %v645 = vadd.f32 %v164, %v644
    %646 = vmatprep.mubr.bf16.mxu0 %v313
    %647 = vmatmul.mubr.bf16.gmra.mxu0 %v312
    %v648 = vpop.f32.mrf.mxu0
    %v649 = vadd.f32 %v169, %v648
    %v650 = vpop.f32.mrf.mxu0
    %v651 = vadd.f32 %v169, %v650
    %v652 = vpop.f32.mrf.mxu0
    %v653 = vadd.f32 %v174, %v652
    %v654 = vpop.f32.mrf.mxu0
    %v655 = vadd.f32 %v174, %v654
    %656 = vmatprep.mubr.bf16.mxu0 %v316
    %657 = vmatmul.mubr.bf16.gmra.mxu0 %v315
    %v658 = vpop.f32.mrf.mxu0
    %v659 = vadd.f32 %v179, %v658
    %v660 = vpop.f32.mrf.mxu0
    %v661 = vadd.f32 %v179, %v660
    %v662 = vpop.f32.mrf.mxu0
    %v663 = vadd.f32 %v184, %v662
    %v664 = vpop.f32.mrf.mxu0
    %v665 = vadd.f32 %v184, %v664
    %666 = vmatprep.mubr.bf16.mxu0 %v319
    %667 = vmatmul.mubr.bf16.gmra.mxu0 %v318
    %v668 = vpop.f32.mrf.mxu0
    %v669 = vadd.f32 %v189, %v668
    %v670 = vpop.f32.mrf.mxu0
    %v671 = vadd.f32 %v189, %v670
    %v672 = vpop.f32.mrf.mxu0
    %v673 = vadd.f32 %v194, %v672
    %v674 = vpop.f32.mrf.mxu0
    %v675 = vadd.f32 %v194, %v674
    %676 = vmatprep.mubr.bf16.mxu0 %v322
    %677 = vmatmul.mubr.bf16.gmra.mxu0 %v321
    %v678 = vpop.f32.mrf.mxu0
    %v679 = vadd.f32 %v199, %v678
    %v680 = vpop.f32.mrf.mxu0
    %v681 = vadd.f32 %v199, %v680
    %v682 = vpop.f32.mrf.mxu0
    %v683 = vadd.f32 %v204, %v682
    %v684 = vpop.f32.mrf.mxu0
    %v685 = vadd.f32 %v204, %v684
    %686 = vmatprep.mubr.bf16.mxu0 %v325
    %687 = vmatmul.mubr.bf16.gmra.mxu0 %v324
    %v688 = vpop.f32.mrf.mxu0
    %v689 = vadd.f32 %v209, %v688
    %v690 = vpop.f32.mrf.mxu0
    %v691 = vadd.f32 %v209, %v690
    %v692 = vpop.f32.mrf.mxu0
    %v693 = vadd.f32 %v214, %v692
    %v694 = vpop.f32.mrf.mxu0
    %v695 = vadd.f32 %v214, %v694
    %696 = vmatprep.mubr.bf16.mxu0 %v328
    %697 = vmatmul.mubr.bf16.gmra.mxu0 %v327
    %v698 = vpop.f32.mrf.mxu0
    %v699 = vadd.f32 %v219, %v698
    %v700 = vpop.f32.mrf.mxu0
    %v701 = vadd.f32 %v219, %v700
    %v702 = vpop.f32.mrf.mxu0
    %v703 = vadd.f32 %v224, %v702
    %v704 = vpop.f32.mrf.mxu0
    %v705 = vadd.f32 %v224, %v704
    %706 = vdwg.mxu0
    %707 = vmatprep.subr.bf16.mxu0 %v545
    %708 = vmatpush1.bf16.msra.mxu0 %v544
    %709 = vmatprep.subr.bf16.mxu0 %v543
    %710 = vmatpush1.bf16.msra.mxu0 %v542
    %711 = vmatprep.subr.bf16.mxu0 %v541
    %712 = vmatpush1.bf16.msra.mxu0 %v540
    %713 = vmatprep.subr.bf16.mxu0 %v539
    %714 = vmatpush1.bf16.msra.mxu0 %v538
    %715 = vmatprep.subr.bf16.mxu0 %v537
    %716 = vmatpush1.bf16.msra.mxu0 %v536
    %717 = vmatprep.subr.bf16.mxu0 %v535
    %718 = vmatpush1.bf16.msra.mxu0 %v534
    %719 = vmatprep.subr.bf16.mxu0 %v533
    %720 = vmatpush1.bf16.msra.mxu0 %v532
    %721 = vmatprep.subr.bf16.mxu0 %v531
    %722 = vmatpush1.bf16.msra.mxu0 %v530
    %723 = vmatprep.subr.bf16.mxu0 0
    %724 = vmatpush2.bf16.msra.mxu0 0
    %725 = vmatprep.subr.bf16.mxu0 0
    %726 = vmatpush2.bf16.msra.mxu0 0
    %727 = vmatprep.subr.bf16.mxu0 0
    %728 = vmatpush2.bf16.msra.mxu0 0
    %729 = vmatprep.subr.bf16.mxu0 0
    %730 = vmatpush2.bf16.msra.mxu0 0
    %731 = vmatprep.subr.bf16.mxu0 0
    %732 = vmatpush2.bf16.msra.mxu0 0
    %733 = vmatprep.subr.bf16.mxu0 0
    %734 = vmatpush2.bf16.msra.mxu0 0
    %735 = vmatprep.subr.bf16.mxu0 0
    %736 = vmatpush2.bf16.msra.mxu0 0
    %737 = vmatprep.subr.bf16.mxu0 0
    %738 = vmatpush2.bf16.msra.mxu0 0
    %739 = vmatprep.mubr.bf16.mxu0 0
    %740 = vmatmul.mubr.bf16.gmra.mxu0 %v308
    %v741 = vpop.f32.mrf.mxu0
    %v742 = vadd.f32 %v629, %v741
    %v743 = vpop.f32.mrf.mxu0
    %v744 = vadd.f32 %v631, %v743
    %v745 = vpop.f32.mrf.mxu0
    %v746 = vadd.f32 %v633, %v745
    %v747 = vpop.f32.mrf.mxu0
    %v748 = vadd.f32 %v635, %v747
    %749 = vmatprep.mubr.bf16.mxu0 0
    %750 = vmatmul.mubr.bf16.gmra.mxu0 %v311
    %v751 = vpop.f32.mrf.mxu0
    %v752 = vadd.f32 %v639, %v751
    %v753 = vpop.f32.mrf.mxu0
    %v754 = vadd.f32 %v641, %v753
    %v755 = vpop.f32.mrf.mxu0
    %v756 = vadd.f32 %v643, %v755
    %v757 = vpop.f32.mrf.mxu0
    %v758 = vadd.f32 %v645, %v757
    %759 = vmatprep.mubr.bf16.mxu0 0
    %760 = vmatmul.mubr.bf16.gmra.mxu0 %v314
    %v761 = vpop.f32.mrf.mxu0
    %v762 = vadd.f32 %v649, %v761
    %v763 = vpop.f32.mrf.mxu0
    %v764 = vadd.f32 %v651, %v763
    %v765 = vpop.f32.mrf.mxu0
    %v766 = vadd.f32 %v653, %v765
    %v767 = vpop.f32.mrf.mxu0
    %v768 = vadd.f32 %v655, %v767
    %769 = vmatprep.mubr.bf16.mxu0 0
    %770 = vmatmul.mubr.bf16.gmra.mxu0 %v317
    %v771 = vpop.f32.mrf.mxu0
    %v772 = vadd.f32 %v659, %v771
    %v773 = vpop.f32.mrf.mxu0
    %v774 = vadd.f32 %v661, %v773
    %v775 = vpop.f32.mrf.mxu0
    %v776 = vadd.f32 %v663, %v775
    %v777 = vpop.f32.mrf.mxu0
    %v778 = vadd.f32 %v665, %v777
    %779 = vmatprep.mubr.bf16.mxu0 0
    %780 = vmatmul.mubr.bf16.gmra.mxu0 %v320
    %v781 = vpop.f32.mrf.mxu0
    %v782 = vadd.f32 %v669, %v781
    %v783 = vpop.f32.mrf.mxu0
    %v784 = vadd.f32 %v671, %v783
    %v785 = vpop.f32.mrf.mxu0
    %v786 = vadd.f32 %v673, %v785
    %v787 = vpop.f32.mrf.mxu0
    %v788 = vadd.f32 %v675, %v787
    %789 = vmatprep.mubr.bf16.mxu0 0
    %790 = vmatmul.mubr.bf16.gmra.mxu0 %v323
    %v791 = vpop.f32.mrf.mxu0
    %v792 = vadd.f32 %v679, %v791
    %v793 = vpop.f32.mrf.mxu0
    %v794 = vadd.f32 %v681, %v793
    %v795 = vpop.f32.mrf.mxu0
    %v796 = vadd.f32 %v683, %v795
    %v797 = vpop.f32.mrf.mxu0
    %v798 = vadd.f32 %v685, %v797
    %799 = vmatprep.mubr.bf16.mxu0 0
    %800 = vmatmul.mubr.bf16.gmra.mxu0 %v326
    %v801 = vpop.f32.mrf.mxu0
    %v802 = vadd.f32 %v689, %v801
    %v803 = vpop.f32.mrf.mxu0
    %v804 = vadd.f32 %v691, %v803
    %v805 = vpop.f32.mrf.mxu0
    %v806 = vadd.f32 %v693, %v805
    %v807 = vpop.f32.mrf.mxu0
    %v808 = vadd.f32 %v695, %v807
    %809 = vmatprep.mubr.bf16.mxu0 0
    %810 = vmatmul.mubr.bf16.gmra.mxu0 %v329
    %v811 = vpop.f32.mrf.mxu0
    %v812 = vadd.f32 %v699, %v811
    %v813 = vpop.f32.mrf.mxu0
    %v814 = vadd.f32 %v701, %v813
    %v815 = vpop.f32.mrf.mxu0
    %v816 = vadd.f32 %v703, %v815
    %v817 = vpop.f32.mrf.mxu0
    %v818 = vadd.f32 %v705, %v817
    %819 = vdwg.mxu0
    %v820 = vxor.u32 %v742, 2147483648
    %v821 = vxor.u32 %v744, 2147483648
    %v822 = vxor.u32 %v746, 2147483648
    %v823 = vxor.u32 %v748, 2147483648
    %v824 = vxor.u32 %v752, 2147483648
    %v825 = vxor.u32 %v754, 2147483648
    %v826 = vxor.u32 %v756, 2147483648
    %v827 = vxor.u32 %v758, 2147483648
    %v828 = vxor.u32 %v762, 2147483648
    %v829 = vxor.u32 %v764, 2147483648
    %v830 = vxor.u32 %v766, 2147483648
    %v831 = vxor.u32 %v768, 2147483648
    %v832 = vxor.u32 %v772, 2147483648
    %v833 = vxor.u32 %v774, 2147483648
    %v834 = vxor.u32 %v776, 2147483648
    %v835 = vxor.u32 %v778, 2147483648
    %v836 = vxor.u32 %v782, 2147483648
    %v837 = vxor.u32 %v784, 2147483648
    %v838 = vxor.u32 %v786, 2147483648
    %v839 = vxor.u32 %v788, 2147483648
    %v840 = vxor.u32 %v792, 2147483648
    %v841 = vxor.u32 %v794, 2147483648
    %v842 = vxor.u32 %v796, 2147483648
    %v843 = vxor.u32 %v798, 2147483648
    %v844 = vmul.f32 %v820, 1.442695
    %v845 = vpow.pop %v844
    %v846 = vmul.f32 %v821, 1.442695
    %v847 = vpow.pop %v846
    %v848 = vmul.f32 %v822, 1.442695
    %v849 = vpow.pop %v848
    %v850 = vmul.f32 %v823, 1.442695
    %v851 = vpow.pop %v850
    %v852 = vmul.f32 %v824, 1.442695
    %v853 = vpow.pop %v852
    %v854 = vmul.f32 %v825, 1.442695
    %v855 = vpow.pop %v854
    %v856 = vmul.f32 %v826, 1.442695
    %v857 = vpow.pop %v856
    %v858 = vmul.f32 %v827, 1.442695
    %v859 = vpow.pop %v858
    %v860 = vmul.f32 %v828, 1.442695
    %v861 = vpow.pop %v860
    %v862 = vmul.f32 %v829, 1.442695
    %v863 = vpow.pop %v862
    %v864 = vmul.f32 %v830, 1.442695
    %v865 = vpow.pop %v864
    %v866 = vmul.f32 %v831, 1.442695
    %v867 = vpow.pop %v866
    %v868 = vmul.f32 %v832, 1.442695
    %v869 = vpow.pop %v868
    %v870 = vmul.f32 %v833, 1.442695
    %v871 = vpow.pop %v870
    %v872 = vmul.f32 %v834, 1.442695
    %v873 = vpow.pop %v872
    %v874 = vmul.f32 %v835, 1.442695
    %v875 = vpow.pop %v874
    %v876 = vmul.f32 %v836, 1.442695
    %v877 = vpow.pop %v876
    %v878 = vmul.f32 %v837, 1.442695
    %v879 = vpow.pop %v878
    %v880 = vmul.f32 %v838, 1.442695
    %v881 = vpow.pop %v880
    %v882 = vmul.f32 %v839, 1.442695
    %v883 = vpow.pop %v882
    %v884 = vmul.f32 %v840, 1.442695
    %v885 = vpow.pop %v884
    %v886 = vmul.f32 %v841, 1.442695
    %v887 = vpow.pop %v886
    %v888 = vmul.f32 %v842, 1.442695
    %v889 = vpow.pop %v888
    %v890 = vmul.f32 %v843, 1.442695
    %v891 = vpow.pop %v890
    %v892 = vadd.f32 %v845, 1.0
    %v893 = vadd.f32 %v847, 1.0
    %v894 = vadd.f32 %v849, 1.0
    %v895 = vadd.f32 %v851, 1.0
    %v896 = vadd.f32 %v853, 1.0
    %v897 = vadd.f32 %v855, 1.0
    %v898 = vadd.f32 %v857, 1.0
    %v899 = vadd.f32 %v859, 1.0
    %v900 = vadd.f32 %v861, 1.0
    %v901 = vadd.f32 %v863, 1.0
    %v902 = vadd.f32 %v865, 1.0
    %v903 = vadd.f32 %v867, 1.0
    %v904 = vadd.f32 %v869, 1.0
    %v905 = vadd.f32 %v871, 1.0
    %v906 = vadd.f32 %v873, 1.0
    %v907 = vadd.f32 %v875, 1.0
    %v908 = vadd.f32 %v877, 1.0
    %v909 = vadd.f32 %v879, 1.0
    %v910 = vadd.f32 %v881, 1.0
    %v911 = vadd.f32 %v883, 1.0
    %v912 = vadd.f32 %v885, 1.0
    %v913 = vadd.f32 %v887, 1.0
    %v914 = vadd.f32 %v889, 1.0
    %v915 = vadd.f32 %v891, 1.0
    %v916 = vrcp.pop %v892
    %v917 = vmul.f32 1.0, %v916
    %v918 = vrcp.pop %v893
    %v919 = vmul.f32 1.0, %v918
    %v920 = vrcp.pop %v894
    %v921 = vmul.f32 1.0, %v920
    %v922 = vrcp.pop %v895
    %v923 = vmul.f32 1.0, %v922
    %v924 = vrcp.pop %v896
    %v925 = vmul.f32 1.0, %v924
    %v926 = vrcp.pop %v897
    %v927 = vmul.f32 1.0, %v926
    %v928 = vrcp.pop %v898
    %v929 = vmul.f32 1.0, %v928
    %v930 = vrcp.pop %v899
    %v931 = vmul.f32 1.0, %v930
    %v932 = vrcp.pop %v900
    %v933 = vmul.f32 1.0, %v932
    %v934 = vrcp.pop %v901
    %v935 = vmul.f32 1.0, %v934
    %v936 = vrcp.pop %v902
    %v937 = vmul.f32 1.0, %v936
    %v938 = vrcp.pop %v903
    %v939 = vmul.f32 1.0, %v938
    %v940 = vrcp.pop %v904
    %v941 = vmul.f32 1.0, %v940
    %v942 = vrcp.pop %v905
    %v943 = vmul.f32 1.0, %v942
    %v944 = vrcp.pop %v906
    %v945 = vmul.f32 1.0, %v944
    %v946 = vrcp.pop %v907
    %v947 = vmul.f32 1.0, %v946
    %v948 = vrcp.pop %v908
    %v949 = vmul.f32 1.0, %v948
    %v950 = vrcp.pop %v909
    %v951 = vmul.f32 1.0, %v950
    %v952 = vrcp.pop %v910
    %v953 = vmul.f32 1.0, %v952
    %v954 = vrcp.pop %v911
    %v955 = vmul.f32 1.0, %v954
    %v956 = vrcp.pop %v912
    %v957 = vmul.f32 1.0, %v956
    %v958 = vrcp.pop %v913
    %v959 = vmul.f32 1.0, %v958
    %v960 = vrcp.pop %v914
    %v961 = vmul.f32 1.0, %v960
    %v962 = vrcp.pop %v915
    %v963 = vmul.f32 1.0, %v962
    %v964 = vtanh.pop %v802
    %v965 = vtanh.pop %v804
    %v966 = vtanh.pop %v806
    %v967 = vtanh.pop %v808
    %v968 = vtanh.pop %v812
    %v969 = vtanh.pop %v814
    %v970 = vtanh.pop %v816
    %v971 = vtanh.pop %v818
    %v972 = vld [vmem:[%s3] sm:$0xff]
    %v973 = vld [vmem:[%s3 + $0x8] sm:$0xff]
    %v974 = vld [vmem:[%s3 + $0x10] sm:$0xff]
    %v975 = vld [vmem:[%s3 + $0x18] sm:$0xff]
    %v976 = vld [vmem:[%s3 + $0x20] sm:$0xff]
    %v977 = vld [vmem:[%s3 + $0x28] sm:$0xff]
    %v978 = vld [vmem:[%s3 + $0x30] sm:$0xff]
    %v979 = vld [vmem:[%s3 + $0x38] sm:$0xff]
    %v980 = vmul.f32 %v933, %v972
    %v981 = vmul.f32 %v935, %v973
    %v982 = vmul.f32 %v937, %v974
    %v983 = vmul.f32 %v939, %v975
    %v984 = vmul.f32 %v941, %v976
    %v985 = vmul.f32 %v943, %v977
    %v986 = vmul.f32 %v945, %v978
    %v987 = vmul.f32 %v947, %v979
    %v988 = vmul.f32 %v917, %v964
    %v989 = vmul.f32 %v919, %v965
    %v990 = vmul.f32 %v921, %v966
    %v991 = vmul.f32 %v923, %v967
    %v992 = vmul.f32 %v925, %v968
    %v993 = vmul.f32 %v927, %v969
    %v994 = vmul.f32 %v929, %v970
    %v995 = vmul.f32 %v931, %v971
    %v996 = vadd.f32 %v980, %v988
    %v997 = vadd.f32 %v981, %v989
    %v998 = vadd.f32 %v982, %v990
    %v999 = vadd.f32 %v983, %v991
    %v1000 = vadd.f32 %v984, %v992
    %v1001 = vadd.f32 %v985, %v993
    %v1002 = vadd.f32 %v986, %v994
    %v1003 = vadd.f32 %v987, %v995
    %v1004 = vtanh.pop %v996
    %v1005 = vtanh.pop %v997
    %v1006 = vtanh.pop %v998
    %v1007 = vtanh.pop %v999
    %v1008 = vtanh.pop %v1000
    %v1009 = vtanh.pop %v1001
    %v1010 = vtanh.pop %v1002
    %v1011 = vtanh.pop %v1003
    %v1012 = vmul.f32 %v949, %v1004
    %v1013 = vmul.f32 %v951, %v1005
    %v1014 = vmul.f32 %v953, %v1006
    %v1015 = vmul.f32 %v955, %v1007
    %v1016 = vmul.f32 %v957, %v1008
    %v1017 = vmul.f32 %v959, %v1009
    %v1018 = vmul.f32 %v961, %v1010
    %v1019 = vmul.f32 %v963, %v1011
    %1020 = vst [vmem:[#allocation7] sm:$0xff] %v1012
    %1021 = vst [vmem:[#allocation7 + $0x8] sm:$0xff] %v1013
    %1022 = vst [vmem:[#allocation7 + $0x10] sm:$0xff] %v1014
    %1023 = vst [vmem:[#allocation7 + $0x18] sm:$0xff] %v1015
    %1024 = vst [vmem:[#allocation7 + $0x20] sm:$0xff] %v1016
    %1025 = vst [vmem:[#allocation7 + $0x28] sm:$0xff] %v1017
    %1026 = vst [vmem:[#allocation7 + $0x30] sm:$0xff] %v1018
    %1027 = vst [vmem:[#allocation7 + $0x38] sm:$0xff] %v1019
    %1028 = vst [vmem:[#allocation8] sm:$0xff] %v996
    %1029 = vst [vmem:[#allocation8 + $0x8] sm:$0xff] %v997
    %1030 = vst [vmem:[#allocation8 + $0x10] sm:$0xff] %v998
    %1031 = vst [vmem:[#allocation8 + $0x18] sm:$0xff] %v999
    %1032 = vst [vmem:[#allocation8 + $0x20] sm:$0xff] %v1000
    %1033 = vst [vmem:[#allocation8 + $0x28] sm:$0xff] %v1001
    %1034 = vst [vmem:[#allocation8 + $0x30] sm:$0xff] %v1002
    %1035 = vst [vmem:[#allocation8 + $0x38] sm:$0xff] %v1003
    %s1036 = scalar_lea.vmem [#allocation2], 384
    %v1037 = vld [vmem:[%s1036] sm:$0xff]
    %v1038 = vld [vmem:[%s1036 + $0x8] sm:$0xff]
    %v1039 = vld [vmem:[%s1036 + $0x10] sm:$0xff]
    %v1040 = vld [vmem:[%s1036 + $0x18] sm:$0xff]
    %v1041 = vld [vmem:[%s1036 + $0x20] sm:$0xff]
    %v1042 = vld [vmem:[%s1036 + $0x28] sm:$0xff]
    %v1043 = vld [vmem:[%s1036 + $0x30] sm:$0xff]
    %v1044 = vld [vmem:[%s1036 + $0x38] sm:$0xff]
    %v1045 = vld [vmem:[%s1036 + $0x40] sm:$0xff]
    %v1046 = vld [vmem:[%s1036 + $0x48] sm:$0xff]
    %v1047 = vld [vmem:[%s1036 + $0x50] sm:$0xff]
    %v1048 = vld [vmem:[%s1036 + $0x58] sm:$0xff]
    %v1049 = vld [vmem:[%s1036 + $0x60] sm:$0xff]
    %v1050 = vld [vmem:[%s1036 + $0x68] sm:$0xff]
    %v1051 = vld [vmem:[%s1036 + $0x70] sm:$0xff]
    %v1052 = vld [vmem:[%s1036 + $0x78] sm:$0xff]
    %v1053 = vld [vmem:[%s1036 + $0x80] sm:$0xff]
    %v1054 = vld [vmem:[%s1036 + $0x88] sm:$0xff]
    %v1055 = vld [vmem:[%s1036 + $0x90] sm:$0xff]
    %v1056 = vld [vmem:[%s1036 + $0x98] sm:$0xff]
    %v1057 = vld [vmem:[%s1036 + $0xa0] sm:$0xff]
    %v1058 = vld [vmem:[%s1036 + $0xa8] sm:$0xff]
    %v1059 = vld [vmem:[%s1036 + $0xb0] sm:$0xff]
    %v1060 = vld [vmem:[%s1036 + $0xb8] sm:$0xff]
    %v1061 = vld [vmem:[%s1036 + $0xc0] sm:$0xff]
    %v1062 = vld [vmem:[%s1036 + $0xc8] sm:$0xff]
    %v1063 = vld [vmem:[%s1036 + $0xd0] sm:$0xff]
    %v1064 = vld [vmem:[%s1036 + $0xd8] sm:$0xff]
    %v1065 = vld [vmem:[%s1036 + $0xe0] sm:$0xff]
    %v1066 = vld [vmem:[%s1036 + $0xe8] sm:$0xff]
    %v1067 = vld [vmem:[%s1036 + $0xf0] sm:$0xff]
    %v1068 = vld [vmem:[%s1036 + $0xf8] sm:$0xff]
    %v1069 = vld [vmem:[%s1036 + $0x100] sm:$0xff]
    %v1070 = vld [vmem:[%s1036 + $0x108] sm:$0xff]
    %v1071 = vld [vmem:[%s1036 + $0x110] sm:$0xff]
    %v1072 = vld [vmem:[%s1036 + $0x118] sm:$0xff]
    %v1073 = vld [vmem:[%s1036 + $0x120] sm:$0xff]
    %v1074 = vld [vmem:[%s1036 + $0x128] sm:$0xff]
    %v1075 = vld [vmem:[%s1036 + $0x130] sm:$0xff]
    %v1076 = vld [vmem:[%s1036 + $0x138] sm:$0xff]
    %v1077 = vld [vmem:[%s1036 + $0x140] sm:$0xff]
    %v1078 = vld [vmem:[%s1036 + $0x148] sm:$0xff]
    %v1079 = vld [vmem:[%s1036 + $0x150] sm:$0xff]
    %v1080 = vld [vmem:[%s1036 + $0x158] sm:$0xff]
    %v1081 = vld [vmem:[%s1036 + $0x160] sm:$0xff]
    %v1082 = vld [vmem:[%s1036 + $0x168] sm:$0xff]
    %v1083 = vld [vmem:[%s1036 + $0x170] sm:$0xff]
    %v1084 = vld [vmem:[%s1036 + $0x178] sm:$0xff]
    %v1133 = vunpack.c.l.b16 %v1037
    %v1134 = vunpack.c.h.b16 %v1037
    %v1135 = vunpack.c.l.b16 %v1038
    %v1136 = vunpack.c.h.b16 %v1038
    %v1137 = vunpack.c.l.b16 %v1039
    %v1138 = vunpack.c.h.b16 %v1039
    %v1139 = vunpack.c.l.b16 %v1040
    %v1140 = vunpack.c.h.b16 %v1040
    %v1141 = vunpack.c.l.b16 %v1041
    %v1142 = vunpack.c.h.b16 %v1041
    %v1143 = vunpack.c.l.b16 %v1042
    %v1144 = vunpack.c.h.b16 %v1042
    %v1145 = vunpack.c.l.b16 %v1043
    %v1146 = vunpack.c.h.b16 %v1043
    %v1147 = vunpack.c.l.b16 %v1044
    %v1148 = vunpack.c.h.b16 %v1044
    %v1149 = vunpack.c.l.b16 %v1045
    %v1150 = vunpack.c.h.b16 %v1045
    %v1151 = vunpack.c.l.b16 %v1046
    %v1152 = vunpack.c.h.b16 %v1046
    %v1153 = vunpack.c.l.b16 %v1047
    %v1154 = vunpack.c.h.b16 %v1047
    %v1155 = vunpack.c.l.b16 %v1048
    %v1156 = vunpack.c.h.b16 %v1048
    %v1157 = vunpack.c.l.b16 %v1049
    %v1158 = vunpack.c.h.b16 %v1049
    %v1159 = vunpack.c.l.b16 %v1050
    %v1160 = vunpack.c.h.b16 %v1050
    %v1161 = vunpack.c.l.b16 %v1051
    %v1162 = vunpack.c.h.b16 %v1051
    %v1163 = vunpack.c.l.b16 %v1052
    %v1164 = vunpack.c.h.b16 %v1052
    %v1165 = vunpack.c.l.b16 %v1053
    %v1166 = vunpack.c.h.b16 %v1053
    %v1167 = vunpack.c.l.b16 %v1054
    %v1168 = vunpack.c.h.b16 %v1054
    %v1169 = vunpack.c.l.b16 %v1055
    %v1170 = vunpack.c.h.b16 %v1055
    %v1171 = vunpack.c.l.b16 %v1056
    %v1172 = vunpack.c.h.b16 %v1056
    %v1173 = vunpack.c.l.b16 %v1057
    %v1174 = vunpack.c.h.b16 %v1057
    %v1175 = vunpack.c.l.b16 %v1058
    %v1176 = vunpack.c.h.b16 %v1058
    %v1177 = vunpack.c.l.b16 %v1059
    %v1178 = vunpack.c.h.b16 %v1059
    %v1179 = vunpack.c.l.b16 %v1060
    %v1180 = vunpack.c.h.b16 %v1060
    %v1181 = vunpack.c.l.b16 %v1061
    %v1182 = vunpack.c.h.b16 %v1061
    %v1183 = vunpack.c.l.b16 %v1062
    %v1184 = vunpack.c.h.b16 %v1062
    %v1185 = vunpack.c.l.b16 %v1063
    %v1186 = vunpack.c.h.b16 %v1063
    %v1187 = vunpack.c.l.b16 %v1064
    %v1188 = vunpack.c.h.b16 %v1064
    %v1189 = vunpack.c.l.b16 %v1065
    %v1190 = vunpack.c.h.b16 %v1065
    %v1191 = vunpack.c.l.b16 %v1066
    %v1192 = vunpack.c.h.b16 %v1066
    %v1193 = vunpack.c.l.b16 %v1067
    %v1194 = vunpack.c.h.b16 %v1067
    %v1195 = vunpack.c.l.b16 %v1068
    %v1196 = vunpack.c.h.b16 %v1068
    %v1197 = vunpack.c.l.b16 %v1069
    %v1198 = vunpack.c.h.b16 %v1069
    %v1199 = vunpack.c.l.b16 %v1070
    %v1200 = vunpack.c.h.b16 %v1070
    %v1201 = vunpack.c.l.b16 %v1071
    %v1202 = vunpack.c.h.b16 %v1071
    %v1203 = vunpack.c.l.b16 %v1072
    %v1204 = vunpack.c.h.b16 %v1072
    %v1205 = vunpack.c.l.b16 %v1073
    %v1206 = vunpack.c.h.b16 %v1073
    %v1207 = vunpack.c.l.b16 %v1074
    %v1208 = vunpack.c.h.b16 %v1074
    %v1209 = vunpack.c.l.b16 %v1075
    %v1210 = vunpack.c.h.b16 %v1075
    %v1211 = vunpack.c.l.b16 %v1076
    %v1212 = vunpack.c.h.b16 %v1076
    %v1213 = vunpack.c.l.b16 %v1077
    %v1214 = vunpack.c.h.b16 %v1077
    %v1215 = vunpack.c.l.b16 %v1078
    %v1216 = vunpack.c.h.b16 %v1078
    %v1217 = vunpack.c.l.b16 %v1079
    %v1218 = vunpack.c.h.b16 %v1079
    %v1219 = vunpack.c.l.b16 %v1080
    %v1220 = vunpack.c.h.b16 %v1080
    %v1221 = vunpack.c.l.b16 %v1081
    %v1222 = vunpack.c.h.b16 %v1081
    %v1223 = vunpack.c.l.b16 %v1082
    %v1224 = vunpack.c.h.b16 %v1082
    %v1225 = vunpack.c.l.b16 %v1083
    %v1226 = vunpack.c.h.b16 %v1083
    %v1227 = vunpack.c.l.b16 %v1084
    %v1228 = vunpack.c.h.b16 %v1084
    %v1229 = vpack.c.b16 %v1135, %v1133
    %v1230 = vpack.c.b16 %v1136, %v1134
    %v1231 = vpack.c.b16 %v1139, %v1137
    %v1232 = vpack.c.b16 %v1140, %v1138
    %v1233 = vpack.c.b16 %v1143, %v1141
    %v1234 = vpack.c.b16 %v1144, %v1142
    %v1235 = vpack.c.b16 %v1147, %v1145
    %v1236 = vpack.c.b16 %v1148, %v1146
    %v1237 = vpack.c.b16 %v1151, %v1149
    %v1238 = vpack.c.b16 %v1152, %v1150
    %v1239 = vpack.c.b16 %v1155, %v1153
    %v1240 = vpack.c.b16 %v1156, %v1154
    %v1241 = vpack.c.b16 %v1159, %v1157
    %v1242 = vpack.c.b16 %v1160, %v1158
    %v1243 = vpack.c.b16 %v1163, %v1161
    %v1244 = vpack.c.b16 %v1164, %v1162
    %v1245 = vpack.c.b16 %v1167, %v1165
    %v1246 = vpack.c.b16 %v1168, %v1166
    %v1247 = vpack.c.b16 %v1171, %v1169
    %v1248 = vpack.c.b16 %v1172, %v1170
    %v1249 = vpack.c.b16 %v1175, %v1173
    %v1250 = vpack.c.b16 %v1176, %v1174
    %v1251 = vpack.c.b16 %v1179, %v1177
    %v1252 = vpack.c.b16 %v1180, %v1178
    %v1253 = vpack.c.b16 %v1183, %v1181
    %v1254 = vpack.c.b16 %v1184, %v1182
    %v1255 = vpack.c.b16 %v1187, %v1185
    %v1256 = vpack.c.b16 %v1188, %v1186
    %v1257 = vpack.c.b16 %v1191, %v1189
    %v1258 = vpack.c.b16 %v1192, %v1190
    %v1259 = vpack.c.b16 %v1195, %v1193
    %v1260 = vpack.c.b16 %v1196, %v1194
    %v1261 = vpack.c.b16 %v1199, %v1197
    %v1262 = vpack.c.b16 %v1200, %v1198
    %v1263 = vpack.c.b16 %v1203, %v1201
    %v1264 = vpack.c.b16 %v1204, %v1202
    %v1265 = vpack.c.b16 %v1207, %v1205
    %v1266 = vpack.c.b16 %v1208, %v1206
    %v1267 = vpack.c.b16 %v1211, %v1209
    %v1268 = vpack.c.b16 %v1212, %v1210
    %v1269 = vpack.c.b16 %v1215, %v1213
    %v1270 = vpack.c.b16 %v1216, %v1214
    %v1271 = vpack.c.b16 %v1219, %v1217
    %v1272 = vpack.c.b16 %v1220, %v1218
    %v1273 = vpack.c.b16 %v1223, %v1221
    %v1274 = vpack.c.b16 %v1224, %v1222
    %v1275 = vpack.c.b16 %v1227, %v1225
    %v1276 = vpack.c.b16 %v1228, %v1226
    %1325 = vmatprep.subr.bf16.mxu0 %v1244
    %1326 = vmatpush1.bf16.msra.mxu0 %v1243
    %1327 = vmatprep.subr.bf16.mxu0 %v1242
    %1328 = vmatpush1.bf16.msra.mxu0 %v1241
    %1329 = vmatprep.subr.bf16.mxu0 %v1240
    %1330 = vmatpush1.bf16.msra.mxu0 %v1239
    %1331 = vmatprep.subr.bf16.mxu0 %v1238
    %1332 = vmatpush1.bf16.msra.mxu0 %v1237
    %1333 = vmatprep.subr.bf16.mxu0 %v1236
    %1334 = vmatpush1.bf16.msra.mxu0 %v1235
    %1335 = vmatprep.subr.bf16.mxu0 %v1234
    %1336 = vmatpush1.bf16.msra.mxu0 %v1233
    %1337 = vmatprep.subr.bf16.mxu0 %v1232
    %1338 = vmatpush1.bf16.msra.mxu0 %v1231
    %1339 = vmatprep.subr.bf16.mxu0 %v1230
    %1340 = vmatpush1.bf16.msra.mxu0 %v1229
    %1341 = vmatprep.subr.bf16.mxu0 %v1260
    %1342 = vmatpush2.bf16.msra.mxu0 %v1259
    %1343 = vmatprep.subr.bf16.mxu0 %v1258
    %1344 = vmatpush2.bf16.msra.mxu0 %v1257
    %1345 = vmatprep.subr.bf16.mxu0 %v1256
    %1346 = vmatpush2.bf16.msra.mxu0 %v1255
    %1347 = vmatprep.subr.bf16.mxu0 %v1254
    %1348 = vmatpush2.bf16.msra.mxu0 %v1253
    %1349 = vmatprep.subr.bf16.mxu0 %v1252
    %1350 = vmatpush2.bf16.msra.mxu0 %v1251
    %1351 = vmatprep.subr.bf16.mxu0 %v1250
    %1352 = vmatpush2.bf16.msra.mxu0 %v1249
    %1353 = vmatprep.subr.bf16.mxu0 %v1248
    %1354 = vmatpush2.bf16.msra.mxu0 %v1247
    %1355 = vmatprep.subr.bf16.mxu0 %v1246
    %1356 = vmatpush2.bf16.msra.mxu0 %v1245
    %1357 = vmatprep.mubr.bf16.mxu0 %v307
    %1358 = vmatmul.mubr.bf16.gmra.mxu0 %v306
    %v1359 = vpop.f32.mrf.mxu0
    %v1360 = vadd.f32 %v149, %v1359
    %v1361 = vpop.f32.mrf.mxu0
    %v1362 = vadd.f32 %v149, %v1361
    %v1363 = vpop.f32.mrf.mxu0
    %v1364 = vadd.f32 %v154, %v1363
    %v1365 = vpop.f32.mrf.mxu0
    %v1366 = vadd.f32 %v154, %v1365
    %1367 = vmatprep.mubr.bf16.mxu0 %v310
    %1368 = vmatmul.mubr.bf16.gmra.mxu0 %v309
    %v1369 = vpop.f32.mrf.mxu0
    %v1370 = vadd.f32 %v159, %v1369
    %v1371 = vpop.f32.mrf.mxu0
    %v1372 = vadd.f32 %v159, %v1371
    %v1373 = vpop.f32.mrf.mxu0
    %v1374 = vadd.f32 %v164, %v1373
    %v1375 = vpop.f32.mrf.mxu0
    %v1376 = vadd.f32 %v164, %v1375
    %1377 = vmatprep.mubr.bf16.mxu0 %v313
    %1378 = vmatmul.mubr.bf16.gmra.mxu0 %v312
    %v1379 = vpop.f32.mrf.mxu0
    %v1380 = vadd.f32 %v169, %v1379
    %v1381 = vpop.f32.mrf.mxu0
    %v1382 = vadd.f32 %v169, %v1381
    %v1383 = vpop.f32.mrf.mxu0
    %v1384 = vadd.f32 %v174, %v1383
    %v1385 = vpop.f32.mrf.mxu0
    %v1386 = vadd.f32 %v174, %v1385
    %1387 = vmatprep.mubr.bf16.mxu0 %v316
    %1388 = vmatmul.mubr.bf16.gmra.mxu0 %v315
    %v1389 = vpop.f32.mrf.mxu0
    %v1390 = vadd.f32 %v179, %v1389
    %v1391 = vpop.f32.mrf.mxu0
    %v1392 = vadd.f32 %v179, %v1391
    %v1393 = vpop.f32.mrf.mxu0
    %v1394 = vadd.f32 %v184, %v1393
    %v1395 = vpop.f32.mrf.mxu0
    %v1396 = vadd.f32 %v184, %v1395
    %1397 = vmatprep.mubr.bf16.mxu0 %v319
    %1398 = vmatmul.mubr.bf16.gmra.mxu0 %v318
    %v1399 = vpop.f32.mrf.mxu0
    %v1400 = vadd.f32 %v189, %v1399
    %v1401 = vpop.f32.mrf.mxu0
    %v1402 = vadd.f32 %v189, %v1401
    %v1403 = vpop.f32.mrf.mxu0
    %v1404 = vadd.f32 %v194, %v1403
    %v1405 = vpop.f32.mrf.mxu0
    %v1406 = vadd.f32 %v194, %v1405
    %1407 = vmatprep.mubr.bf16.mxu0 %v322
    %1408 = vmatmul.mubr.bf16.gmra.mxu0 %v321
    %v1409 = vpop.f32.mrf.mxu0
    %v1410 = vadd.f32 %v199, %v1409
    %v1411 = vpop.f32.mrf.mxu0
    %v1412 = vadd.f32 %v199, %v1411
    %v1413 = vpop.f32.mrf.mxu0
    %v1414 = vadd.f32 %v204, %v1413
    %v1415 = vpop.f32.mrf.mxu0
    %v1416 = vadd.f32 %v204, %v1415
    %1417 = vmatprep.mubr.bf16.mxu0 %v325
    %1418 = vmatmul.mubr.bf16.gmra.mxu0 %v324
    %v1419 = vpop.f32.mrf.mxu0
    %v1420 = vadd.f32 %v209, %v1419
    %v1421 = vpop.f32.mrf.mxu0
    %v1422 = vadd.f32 %v209, %v1421
    %v1423 = vpop.f32.mrf.mxu0
    %v1424 = vadd.f32 %v214, %v1423
    %v1425 = vpop.f32.mrf.mxu0
    %v1426 = vadd.f32 %v214, %v1425
    %1427 = vmatprep.mubr.bf16.mxu0 %v328
    %1428 = vmatmul.mubr.bf16.gmra.mxu0 %v327
    %v1429 = vpop.f32.mrf.mxu0
    %v1430 = vadd.f32 %v219, %v1429
    %v1431 = vpop.f32.mrf.mxu0
    %v1432 = vadd.f32 %v219, %v1431
    %v1433 = vpop.f32.mrf.mxu0
    %v1434 = vadd.f32 %v224, %v1433
    %v1435 = vpop.f32.mrf.mxu0
    %v1436 = vadd.f32 %v224, %v1435
    %1437 = vdwg.mxu0
    %1438 = vmatprep.subr.bf16.mxu0 %v1276
    %1439 = vmatpush1.bf16.msra.mxu0 %v1275
    %1440 = vmatprep.subr.bf16.mxu0 %v1274
    %1441 = vmatpush1.bf16.msra.mxu0 %v1273
    %1442 = vmatprep.subr.bf16.mxu0 %v1272
    %1443 = vmatpush1.bf16.msra.mxu0 %v1271
    %1444 = vmatprep.subr.bf16.mxu0 %v1270
    %1445 = vmatpush1.bf16.msra.mxu0 %v1269
    %1446 = vmatprep.subr.bf16.mxu0 %v1268
    %1447 = vmatpush1.bf16.msra.mxu0 %v1267
    %1448 = vmatprep.subr.bf16.mxu0 %v1266
    %1449 = vmatpush1.bf16.msra.mxu0 %v1265
    %1450 = vmatprep.subr.bf16.mxu0 %v1264
    %1451 = vmatpush1.bf16.msra.mxu0 %v1263
    %1452 = vmatprep.subr.bf16.mxu0 %v1262
    %1453 = vmatpush1.bf16.msra.mxu0 %v1261
    %1454 = vmatprep.subr.bf16.mxu0 0
    %1455 = vmatpush2.bf16.msra.mxu0 0
    %1456 = vmatprep.subr.bf16.mxu0 0
    %1457 = vmatpush2.bf16.msra.mxu0 0
    %1458 = vmatprep.subr.bf16.mxu0 0
    %1459 = vmatpush2.bf16.msra.mxu0 0
    %1460 = vmatprep.subr.bf16.mxu0 0
    %1461 = vmatpush2.bf16.msra.mxu0 0
    %1462 = vmatprep.subr.bf16.mxu0 0
    %1463 = vmatpush2.bf16.msra.mxu0 0
    %1464 = vmatprep.subr.bf16.mxu0 0
    %1465 = vmatpush2.bf16.msra.mxu0 0
    %1466 = vmatprep.subr.bf16.mxu0 0
    %1467 = vmatpush2.bf16.msra.mxu0 0
    %1468 = vmatprep.subr.bf16.mxu0 0
    %1469 = vmatpush2.bf16.msra.mxu0 0
    %1470 = vmatprep.mubr.bf16.mxu0 0
    %1471 = vmatmul.mubr.bf16.gmra.mxu0 %v308
    %v1472 = vpop.f32.mrf.mxu0
    %v1473 = vadd.f32 %v1360, %v1472
    %v1474 = vpop.f32.mrf.mxu0
    %v1475 = vadd.f32 %v1362, %v1474
    %v1476 = vpop.f32.mrf.mxu0
    %v1477 = vadd.f32 %v1364, %v1476
    %v1478 = vpop.f32.mrf.mxu0
    %v1479 = vadd.f32 %v1366, %v1478
    %1480 = vmatprep.mubr.bf16.mxu0 0
    %1481 = vmatmul.mubr.bf16.gmra.mxu0 %v311
    %v1482 = vpop.f32.mrf.mxu0
    %v1483 = vadd.f32 %v1370, %v1482
    %v1484 = vpop.f32.mrf.mxu0
    %v1485 = vadd.f32 %v1372, %v1484
    %v1486 = vpop.f32.mrf.mxu0
    %v1487 = vadd.f32 %v1374, %v1486
    %v1488 = vpop.f32.mrf.mxu0
    %v1489 = vadd.f32 %v1376, %v1488
    %1490 = vmatprep.mubr.bf16.mxu0 0
    %1491 = vmatmul.mubr.bf16.gmra.mxu0 %v314
    %v1492 = vpop.f32.mrf.mxu0
    %v1493 = vadd.f32 %v1380, %v1492
    %v1494 = vpop.f32.mrf.mxu0
    %v1495 = vadd.f32 %v1382, %v1494
    %v1496 = vpop.f32.mrf.mxu0
    %v1497 = vadd.f32 %v1384, %v1496
    %v1498 = vpop.f32.mrf.mxu0
    %v1499 = vadd.f32 %v1386, %v1498
    %1500 = vmatprep.mubr.bf16.mxu0 0
    %1501 = vmatmul.mubr.bf16.gmra.mxu0 %v317
    %v1502 = vpop.f32.mrf.mxu0
    %v1503 = vadd.f32 %v1390, %v1502
    %v1504 = vpop.f32.mrf.mxu0
    %v1505 = vadd.f32 %v1392, %v1504
    %v1506 = vpop.f32.mrf.mxu0
    %v1507 = vadd.f32 %v1394, %v1506
    %v1508 = vpop.f32.mrf.mxu0
    %v1509 = vadd.f32 %v1396, %v1508
    %1510 = vmatprep.mubr.bf16.mxu0 0
    %1511 = vmatmul.mubr.bf16.gmra.mxu0 %v320
    %v1512 = vpop.f32.mrf.mxu0
    %v1513 = vadd.f32 %v1400, %v1512
    %v1514 = vpop.f32.mrf.mxu0
    %v1515 = vadd.f32 %v1402, %v1514
    %v1516 = vpop.f32.mrf.mxu0
    %v1517 = vadd.f32 %v1404, %v1516
    %v1518 = vpop.f32.mrf.mxu0
    %v1519 = vadd.f32 %v1406, %v1518
    %1520 = vmatprep.mubr.bf16.mxu0 0
    %1521 = vmatmul.mubr.bf16.gmra.mxu0 %v323
    %v1522 = vpop.f32.mrf.mxu0
    %v1523 = vadd.f32 %v1410, %v1522
    %v1524 = vpop.f32.mrf.mxu0
    %v1525 = vadd.f32 %v1412, %v1524
    %v1526 = vpop.f32.mrf.mxu0
    %v1527 = vadd.f32 %v1414, %v1526
    %v1528 = vpop.f32.mrf.mxu0
    %v1529 = vadd.f32 %v1416, %v1528
    %1530 = vmatprep.mubr.bf16.mxu0 0
    %1531 = vmatmul.mubr.bf16.gmra.mxu0 %v326
    %v1532 = vpop.f32.mrf.mxu0
    %v1533 = vadd.f32 %v1420, %v1532
    %v1534 = vpop.f32.mrf.mxu0
    %v1535 = vadd.f32 %v1422, %v1534
    %v1536 = vpop.f32.mrf.mxu0
    %v1537 = vadd.f32 %v1424, %v1536
    %v1538 = vpop.f32.mrf.mxu0
    %v1539 = vadd.f32 %v1426, %v1538
    %1540 = vmatprep.mubr.bf16.mxu0 0
    %1541 = vmatmul.mubr.bf16.gmra.mxu0 %v329
    %v1542 = vpop.f32.mrf.mxu0
    %v1543 = vadd.f32 %v1430, %v1542
    %v1544 = vpop.f32.mrf.mxu0
    %v1545 = vadd.f32 %v1432, %v1544
    %v1546 = vpop.f32.mrf.mxu0
    %v1547 = vadd.f32 %v1434, %v1546
    %v1548 = vpop.f32.mrf.mxu0
    %v1549 = vadd.f32 %v1436, %v1548
    %1550 = vdwg.mxu0
    %v1551 = vxor.u32 %v1473, 2147483648
    %v1552 = vxor.u32 %v1475, 2147483648
    %v1553 = vxor.u32 %v1477, 2147483648
    %v1554 = vxor.u32 %v1479, 2147483648
    %v1555 = vxor.u32 %v1483, 2147483648
    %v1556 = vxor.u32 %v1485, 2147483648
    %v1557 = vxor.u32 %v1487, 2147483648
    %v1558 = vxor.u32 %v1489, 2147483648
    %v1559 = vxor.u32 %v1493, 2147483648
    %v1560 = vxor.u32 %v1495, 2147483648
    %v1561 = vxor.u32 %v1497, 2147483648
    %v1562 = vxor.u32 %v1499, 2147483648
    %v1563 = vxor.u32 %v1503, 2147483648
    %v1564 = vxor.u32 %v1505, 2147483648
    %v1565 = vxor.u32 %v1507, 2147483648
    %v1566 = vxor.u32 %v1509, 2147483648
    %v1567 = vxor.u32 %v1513, 2147483648
    %v1568 = vxor.u32 %v1515, 2147483648
    %v1569 = vxor.u32 %v1517, 2147483648
    %v1570 = vxor.u32 %v1519, 2147483648
    %v1571 = vxor.u32 %v1523, 2147483648
    %v1572 = vxor.u32 %v1525, 2147483648
    %v1573 = vxor.u32 %v1527, 2147483648
    %v1574 = vxor.u32 %v1529, 2147483648
    %v1575 = vmul.f32 %v1551, 1.442695
    %v1576 = vpow.pop %v1575
    %v1577 = vmul.f32 %v1552, 1.442695
    %v1578 = vpow.pop %v1577
    %v1579 = vmul.f32 %v1553, 1.442695
    %v1580 = vpow.pop %v1579
    %v1581 = vmul.f32 %v1554, 1.442695
    %v1582 = vpow.pop %v1581
    %v1583 = vmul.f32 %v1555, 1.442695
    %v1584 = vpow.pop %v1583
    %v1585 = vmul.f32 %v1556, 1.442695
    %v1586 = vpow.pop %v1585
    %v1587 = vmul.f32 %v1557, 1.442695
    %v1588 = vpow.pop %v1587
    %v1589 = vmul.f32 %v1558, 1.442695
    %v1590 = vpow.pop %v1589
    %v1591 = vmul.f32 %v1559, 1.442695
    %v1592 = vpow.pop %v1591
    %v1593 = vmul.f32 %v1560, 1.442695
    %v1594 = vpow.pop %v1593
    %v1595 = vmul.f32 %v1561, 1.442695
    %v1596 = vpow.pop %v1595
    %v1597 = vmul.f32 %v1562, 1.442695
    %v1598 = vpow.pop %v1597
    %v1599 = vmul.f32 %v1563, 1.442695
    %v1600 = vpow.pop %v1599
    %v1601 = vmul.f32 %v1564, 1.442695
    %v1602 = vpow.pop %v1601
    %v1603 = vmul.f32 %v1565, 1.442695
    %v1604 = vpow.pop %v1603
    %v1605 = vmul.f32 %v1566, 1.442695
    %v1606 = vpow.pop %v1605
    %v1607 = vmul.f32 %v1567, 1.442695
    %v1608 = vpow.pop %v1607
    %v1609 = vmul.f32 %v1568, 1.442695
    %v1610 = vpow.pop %v1609
    %v1611 = vmul.f32 %v1569, 1.442695
    %v1612 = vpow.pop %v1611
    %v1613 = vmul.f32 %v1570, 1.442695
    %v1614 = vpow.pop %v1613
    %v1615 = vmul.f32 %v1571, 1.442695
    %v1616 = vpow.pop %v1615
    %v1617 = vmul.f32 %v1572, 1.442695
    %v1618 = vpow.pop %v1617
    %v1619 = vmul.f32 %v1573, 1.442695
    %v1620 = vpow.pop %v1619
    %v1621 = vmul.f32 %v1574, 1.442695
    %v1622 = vpow.pop %v1621
    %v1623 = vadd.f32 %v1576, 1.0
    %v1624 = vadd.f32 %v1578, 1.0
    %v1625 = vadd.f32 %v1580, 1.0
    %v1626 = vadd.f32 %v1582, 1.0
    %v1627 = vadd.f32 %v1584, 1.0
    %v1628 = vadd.f32 %v1586, 1.0
    %v1629 = vadd.f32 %v1588, 1.0
    %v1630 = vadd.f32 %v1590, 1.0
    %v1631 = vadd.f32 %v1592, 1.0
    %v1632 = vadd.f32 %v1594, 1.0
    %v1633 = vadd.f32 %v1596, 1.0
    %v1634 = vadd.f32 %v1598, 1.0
    %v1635 = vadd.f32 %v1600, 1.0
    %v1636 = vadd.f32 %v1602, 1.0
    %v1637 = vadd.f32 %v1604, 1.0
    %v1638 = vadd.f32 %v1606, 1.0
    %v1639 = vadd.f32 %v1608, 1.0
    %v1640 = vadd.f32 %v1610, 1.0
    %v1641 = vadd.f32 %v1612, 1.0
    %v1642 = vadd.f32 %v1614, 1.0
    %v1643 = vadd.f32 %v1616, 1.0
    %v1644 = vadd.f32 %v1618, 1.0
    %v1645 = vadd.f32 %v1620, 1.0
    %v1646 = vadd.f32 %v1622, 1.0
    %v1647 = vrcp.pop %v1623
    %v1648 = vmul.f32 1.0, %v1647
    %v1649 = vrcp.pop %v1624
    %v1650 = vmul.f32 1.0, %v1649
    %v1651 = vrcp.pop %v1625
    %v1652 = vmul.f32 1.0, %v1651
    %v1653 = vrcp.pop %v1626
    %v1654 = vmul.f32 1.0, %v1653
    %v1655 = vrcp.pop %v1627
    %v1656 = vmul.f32 1.0, %v1655
    %v1657 = vrcp.pop %v1628
    %v1658 = vmul.f32 1.0, %v1657
    %v1659 = vrcp.pop %v1629
    %v1660 = vmul.f32 1.0, %v1659
    %v1661 = vrcp.pop %v1630
    %v1662 = vmul.f32 1.0, %v1661
    %v1663 = vrcp.pop %v1631
    %v1664 = vmul.f32 1.0, %v1663
    %v1665 = vrcp.pop %v1632
    %v1666 = vmul.f32 1.0, %v1665
    %v1667 = vrcp.pop %v1633
    %v1668 = vmul.f32 1.0, %v1667
    %v1669 = vrcp.pop %v1634
    %v1670 = vmul.f32 1.0, %v1669
    %v1671 = vrcp.pop %v1635
    %v1672 = vmul.f32 1.0, %v1671
    %v1673 = vrcp.pop %v1636
    %v1674 = vmul.f32 1.0, %v1673
    %v1675 = vrcp.pop %v1637
    %v1676 = vmul.f32 1.0, %v1675
    %v1677 = vrcp.pop %v1638
    %v1678 = vmul.f32 1.0, %v1677
    %v1679 = vrcp.pop %v1639
    %v1680 = vmul.f32 1.0, %v1679
    %v1681 = vrcp.pop %v1640
    %v1682 = vmul.f32 1.0, %v1681
    %v1683 = vrcp.pop %v1641
    %v1684 = vmul.f32 1.0, %v1683
    %v1685 = vrcp.pop %v1642
    %v1686 = vmul.f32 1.0, %v1685
    %v1687 = vrcp.pop %v1643
    %v1688 = vmul.f32 1.0, %v1687
    %v1689 = vrcp.pop %v1644
    %v1690 = vmul.f32 1.0, %v1689
    %v1691 = vrcp.pop %v1645
    %v1692 = vmul.f32 1.0, %v1691
    %v1693 = vrcp.pop %v1646
    %v1694 = vmul.f32 1.0, %v1693
    %v1695 = vtanh.pop %v1533
    %v1696 = vtanh.pop %v1535
    %v1697 = vtanh.pop %v1537
    %v1698 = vtanh.pop %v1539
    %v1699 = vtanh.pop %v1543
    %v1700 = vtanh.pop %v1545
    %v1701 = vtanh.pop %v1547
    %v1702 = vtanh.pop %v1549
    %s1703 = scalar_lea.vmem %s3, 64
    %v1704 = vld [vmem:[%s1703] sm:$0xff]
    %v1705 = vld [vmem:[%s1703 + $0x8] sm:$0xff]
    %v1706 = vld [vmem:[%s1703 + $0x10] sm:$0xff]
    %v1707 = vld [vmem:[%s1703 + $0x18] sm:$0xff]
    %v1708 = vld [vmem:[%s1703 + $0x20] sm:$0xff]
    %v1709 = vld [vmem:[%s1703 + $0x28] sm:$0xff]
    %v1710 = vld [vmem:[%s1703 + $0x30] sm:$0xff]
    %v1711 = vld [vmem:[%s1703 + $0x38] sm:$0xff]
    %v1712 = vmul.f32 %v1664, %v1704
    %v1713 = vmul.f32 %v1666, %v1705
    %v1714 = vmul.f32 %v1668, %v1706
    %v1715 = vmul.f32 %v1670, %v1707
    %v1716 = vmul.f32 %v1672, %v1708
    %v1717 = vmul.f32 %v1674, %v1709
    %v1718 = vmul.f32 %v1676, %v1710
    %v1719 = vmul.f32 %v1678, %v1711
    %v1720 = vmul.f32 %v1648, %v1695
    %v1721 = vmul.f32 %v1650, %v1696
    %v1722 = vmul.f32 %v1652, %v1697
    %v1723 = vmul.f32 %v1654, %v1698
    %v1724 = vmul.f32 %v1656, %v1699
    %v1725 = vmul.f32 %v1658, %v1700
    %v1726 = vmul.f32 %v1660, %v1701
    %v1727 = vmul.f32 %v1662, %v1702
    %v1728 = vadd.f32 %v1712, %v1720
    %v1729 = vadd.f32 %v1713, %v1721
    %v1730 = vadd.f32 %v1714, %v1722
    %v1731 = vadd.f32 %v1715, %v1723
    %v1732 = vadd.f32 %v1716, %v1724
    %v1733 = vadd.f32 %v1717, %v1725
    %v1734 = vadd.f32 %v1718, %v1726
    %v1735 = vadd.f32 %v1719, %v1727
    %v1736 = vtanh.pop %v1728
    %v1737 = vtanh.pop %v1729
    %v1738 = vtanh.pop %v1730
    %v1739 = vtanh.pop %v1731
    %v1740 = vtanh.pop %v1732
    %v1741 = vtanh.pop %v1733
    %v1742 = vtanh.pop %v1734
    %v1743 = vtanh.pop %v1735
    %v1744 = vmul.f32 %v1680, %v1736
    %v1745 = vmul.f32 %v1682, %v1737
    %v1746 = vmul.f32 %v1684, %v1738
    %v1747 = vmul.f32 %v1686, %v1739
    %v1748 = vmul.f32 %v1688, %v1740
    %v1749 = vmul.f32 %v1690, %v1741
    %v1750 = vmul.f32 %v1692, %v1742
    %v1751 = vmul.f32 %v1694, %v1743
    %s1752 = scalar_lea.vmem [#allocation7], 64
    %1753 = vst [vmem:[%s1752] sm:$0xff] %v1744
    %1754 = vst [vmem:[%s1752 + $0x8] sm:$0xff] %v1745
    %1755 = vst [vmem:[%s1752 + $0x10] sm:$0xff] %v1746
    %1756 = vst [vmem:[%s1752 + $0x18] sm:$0xff] %v1747
    %1757 = vst [vmem:[%s1752 + $0x20] sm:$0xff] %v1748
    %1758 = vst [vmem:[%s1752 + $0x28] sm:$0xff] %v1749
    %1759 = vst [vmem:[%s1752 + $0x30] sm:$0xff] %v1750
    %1760 = vst [vmem:[%s1752 + $0x38] sm:$0xff] %v1751
    %s1761 = scalar_lea.vmem [#allocation8], 64
    %1762 = vst [vmem:[%s1761] sm:$0xff] %v1728
    %1763 = vst [vmem:[%s1761 + $0x8] sm:$0xff] %v1729
    %1764 = vst [vmem:[%s1761 + $0x10] sm:$0xff] %v1730
    %1765 = vst [vmem:[%s1761 + $0x18] sm:$0xff] %v1731
    %1766 = vst [vmem:[%s1761 + $0x20] sm:$0xff] %v1732
    %1767 = vst [vmem:[%s1761 + $0x28] sm:$0xff] %v1733
    %1768 = vst [vmem:[%s1761 + $0x30] sm:$0xff] %v1734
    %1769 = vst [vmem:[%s1761 + $0x38] sm:$0xff] %v1735
    // Predicated region
    $region26: #{tpu_custom_call.1} parent=1 // pred_check
      _
    $region27: #{tpu_custom_call.1} parent=1 // pred_check_branch
      %1771 = sbr.rel (0) target = $region29
    $region28: #{tpu_custom_call.1} parent=1 // pred_region
      %s1773 = ssub.s32 2048, 2048
      %1774 = vsyncadd [#allocation4], %s1773
      %s1775 = sshll.u32 [#allocation7], 4
      %s1776 = int_to_ptr.vmem [resolvable:$true] %s1775
      %1781 = dma.vmem_to_hbm [thread:$0]  %s1776, 2048, %s4, [#allocation4], 256, 256, 16
    $region29: #{tpu_custom_call.1} parent=1 // pred_fallthru
      _
    // Predicated region
    $region30: #{tpu_custom_call.1} parent=1 // pred_check
      _
    $region31: #{tpu_custom_call.1} parent=1 // pred_check_branch
      %1783 = sbr.rel (0) target = $region33
    $region32: #{tpu_custom_call.1} parent=1 // pred_region
      %s1785 = ssub.s32 2048, 2048
      %1786 = vsyncadd [#allocation9], %s1785
      %s1787 = sshll.u32 [#allocation8], 4
      %s1788 = int_to_ptr.vmem [resolvable:$true] %s1787
      %1793 = dma.vmem_to_hbm [thread:$0]  %s1788, 2048, %s5, [#allocation9], 256, 256, 16
    $region33: #{tpu_custom_call.1} parent=1 // pred_fallthru
      _
    // Predicated region
    $region34: #{tpu_custom_call.1} parent=1 // pred_check
      _
    $region35: #{tpu_custom_call.1} parent=1 // pred_check_branch
      %1795 = sbr.rel (0) target = $region37
    $region36: #{tpu_custom_call.1} parent=1 // pred_region
      %1796 = dma.done [#allocation4], 2048
    $region37: #{tpu_custom_call.1} parent=1 // pred_fallthru
      _
    // Predicated region
    $region38: #{tpu_custom_call.1} parent=1 // pred_check
      _
    $region39: #{tpu_custom_call.1} parent=1 // pred_check_branch
      %1798 = sbr.rel (0) target = $region41
    $region40: #{tpu_custom_call.1} parent=1 // pred_region
      %1799 = dma.done [#allocation9], 2048
    $region41: #{tpu_custom_call.1} parent=1 // pred_fallthru
      _
    %1800 = vsyncpa [#allocation3], 1
    %1801 = vsyncpa [#allocation6], 1
    %1802 = vsyncpa [#allocation4], 1
    %1803 = vsyncpa [#allocation9], 1

</llo_original>
